<compile_context>
chip_gen: v7x
topology: tpu7x:2x2x1
jax: 0.10.0
libtpu: 0.0.40
codegen_flags: <defaults>
</compile_context>

<pallas_src>
import jax
import jax.numpy as jnp
from jax.experimental import pallas as pl
from jax.experimental.pallas import tpu as pltpu

# ----------------- scaled-down CLIP ViT config -----------------
B = 2                       # batch
C = 3                       # image channels
IMG = 32                    # image height = width
PS = 16                     # patch size (stride == kernel)
PATCHES = (IMG // PS) ** 2  # 4
SEQ = PATCHES + 1           # 5 (CLS + patches)
S_PAD = 8                   # token axis padded to a sublane multiple
D = 64                      # hidden dim (768 in real ViT-B/32)
HEADS = 4
HEAD_DIM = D // HEADS       # 16
MLP = 4 * D                 # 256
PROJ = 32                   # visual projection dim (512 in real CLIP)
NUM_CLASSES = 10
CLS_PAD = 128               # classifier lane padding -> lane-dense output store
NUM_LAYERS = 2              # 12 in real ViT-B/32
EPS = 1e-5
SCALE = HEAD_DIM ** -0.5
K_IN = C * PS * PS          # flattened patch length (768)
BT = B * S_PAD              # 16 token rows
KCOLS = B * HEADS * S_PAD   # 64 packed (batch, head, key) columns

# power-of-two shift/mask helpers for the in-kernel iota mask math
assert S_PAD & (S_PAD - 1) == 0 and HEADS & (HEADS - 1) == 0 and HEAD_DIM & (HEAD_DIM - 1) == 0
SH_S = S_PAD.bit_length() - 1              # //S_PAD
SH_HD = HEAD_DIM.bit_length() - 1          # //HEAD_DIM
SH_BH = (HEADS * S_PAD).bit_length() - 1   # //(HEADS*S_PAD)

# ----- packed f32 "vecs" slab row layout (every D-wide vector lives here) -----
ROW_CLS_POS = 0                 # rows 0..S_PAD-1: class+pos embeddings on padded token grid
ROW_PRE_G = S_PAD               # 8
ROW_PRE_B = S_PAD + 1           # 9
ROW_POST_G = S_PAD + 2          # 10
ROW_POST_B = S_PAD + 3          # 11
ROW_LAYER0 = S_PAD + 4          # 12
(L_LN1G, L_LN1B, L_BQ, L_BK, L_BV, L_BO, L_LN2G, L_LN2B, L_B2) = range(9)
ROWS_PER_LAYER = 9
N_VEC_ROWS = ROW_LAYER0 + NUM_LAYERS * ROWS_PER_LAYER   # 30


# ----------------- helpers traced inside the kernel -----------------
def _ln(x, g, b):
    mu = jnp.mean(x, axis=-1, keepdims=True)
    xc = x - mu
    var = jnp.mean(xc * xc, axis=-1, keepdims=True)
    return xc * jax.lax.rsqrt(var + EPS) * g + b


# ----------------- fused forward kernel -----------------
def _clip_fused_kernel(tokens_ref, patch_w_ref, wqkv_ref, wo_ref, w1_ref, w2_ref,
                       vecs_ref, b1_ref, proj_w_ref, cls_w_ref, cls_b_ref, o_ref):
    f32, bf16 = jnp.float32, jnp.bfloat16

    def vec(i):                      # one (1, D) f32 row from the packed vector slab
        return vecs_ref[i:i + 1, :]

    # ---- patch embedding (CLS/pad pixel rows are zero -> zero embeddings there) ----
    x = jnp.dot(tokens_ref[...], patch_w_ref[...], preferred_element_type=f32)   # (BT, D)
    # + class/positional embeddings (identical per batch element)
    cls_pos = vecs_ref[ROW_CLS_POS:ROW_CLS_POS + S_PAD, :]                        # (S_PAD, D)
    x = x + jnp.concatenate([cls_pos] * B, axis=0)

    # ---- pre-LayerNorm ----
    x = _ln(x, vec(ROW_PRE_G), vec(ROW_PRE_B))

    # ---- constants hoisted out of the layer loop (iota-built, register resident) ----
    r = jax.lax.broadcasted_iota(jnp.int32, (BT, KCOLS), 0)
    c = jax.lax.broadcasted_iota(jnp.int32, (BT, KCOLS), 1)
    same_batch = (r >> SH_S) == (c >> SH_BH)           # query batch == key batch
    real_key = (c & (S_PAD - 1)) < SEQ                 # not a padded key slot
    score_bias = jnp.where(same_batch & real_key, 0.0, -1e30).astype(f32)  # (BT, KCOLS)

    jr = jax.lax.broadcasted_iota(jnp.int32, (KCOLS, D), 0)
    jc = jax.lax.broadcasted_iota(jnp.int32, (KCOLS, D), 1)
    kv_mask = jnp.where(((jr >> SH_S) & (HEADS - 1)) == (jc >> SH_HD), 1.0, 0.0)  # f32 (KCOLS, D)

    gr = jax.lax.broadcasted_iota(jnp.int32, (KCOLS, KCOLS), 0)
    gc = jax.lax.broadcasted_iota(jnp.int32, (KCOLS, KCOLS), 1)
    g_blk = jnp.where((gr >> SH_S) == (gc >> SH_S), 1.0, 0.0).astype(bf16)        # (KCOLS, KCOLS)

    # ---- transformer encoder layers (unrolled; everything VMEM resident) ----
    for l in range(NUM_LAYERS):
        base = ROW_LAYER0 + l * ROWS_PER_LAYER

        # --- self-attention (pre-norm); attention SCALE folded into wq/bq at init ---
        hn = _ln(x, vec(base + L_LN1G), vec(base + L_LN1B))
        qkv = jnp.dot(hn.astype(bf16), wqkv_ref[l], preferred_element_type=f32)   # (BT, 3D)
        q = qkv[:, 0:D] + vec(base + L_BQ)
        k = qkv[:, D:2 * D] + vec(base + L_BK)
        v = qkv[:, 2 * D:3 * D] + vec(base + L_BV)

        # pack K/V as (B*HEADS*S_PAD, D): batch-major, head-major replication, lane head-mask
        k_rep = jnp.concatenate(
            [k[bb * S_PAD:(bb + 1) * S_PAD, :] for bb in range(B) for _ in range(HEADS)], axis=0)
        v_rep = jnp.concatenate(
            [v[bb * S_PAD:(bb + 1) * S_PAD, :] for bb in range(B) for _ in range(HEADS)], axis=0)
        kk = (k_rep * kv_mask).astype(bf16)            # (KCOLS, D)
        vv = (v_rep * kv_mask).astype(bf16)            # (KCOLS, D)

        # every batch & head in ONE scores matmul (contract the feature dim of both)
        s = jnp.einsum('qd,kd->qk', q.astype(bf16), kk,
                       preferred_element_type=f32)     # (BT, KCOLS)
        s = s + score_bias
        s = s - jnp.max(s, axis=-1, keepdims=True)     # per-row shift: softmax invariant
        p = jnp.exp(s)
        # per-(batch, head) softmax denominators via one block-diagonal-ones matmul
        denom = jnp.dot(p.astype(bf16), g_blk, preferred_element_type=f32)
        pn = p * pl.reciprocal(denom + 1e-30, approx=True)   # eps guards cross-batch dead groups
        ctx = jnp.dot(pn.astype(bf16), vv, preferred_element_type=f32)   # (BT, D), head-concat

        attn = jnp.dot(ctx.astype(bf16), wo_ref[l], preferred_element_type=f32) + vec(base + L_BO)
        x = x + attn

        # --- MLP (pre-norm, quickGELU; elementwise kept f32) ---
        hn = _ln(x, vec(base + L_LN2G), vec(base + L_LN2B))
        h1 = jnp.dot(hn.astype(bf16), w1_ref[l], preferred_element_type=f32) + b1_ref[l:l + 1, :]
        h1 = h1 * (1.0 / (1.0 + jnp.exp(-1.702 * h1)))       # quick_gelu
        x = x + jnp.dot(h1.astype(bf16), w2_ref[l], preferred_element_type=f32) + vec(base + L_B2)

    # ---- head: CLS token -> post-LN -> visual projection -> L2 normalize -> classifier ----
    cls = jnp.concatenate([x[bb * S_PAD:bb * S_PAD + 1, :] for bb in range(B)], axis=0)  # (B, D)
    cls = _ln(cls, vec(ROW_POST_G), vec(ROW_POST_B))
    feat = jnp.dot(cls.astype(bf16), proj_w_ref[...], preferred_element_type=f32)        # (B, PROJ)
    feat = feat * jax.lax.rsqrt(jnp.sum(feat * feat, axis=-1, keepdims=True) + 1e-12)
    logits = jnp.dot(feat.astype(bf16), cls_w_ref[...], preferred_element_type=f32) + cls_b_ref[...]
    o_ref[...] = logits                                   # (B, CLS_PAD) lane-dense store


# ----------------- wrapper: layout glue + single pallas_call -----------------
def _clip_forward(x, params):
    # patch extraction (pure layout glue): NCHW -> per-patch rows ordered (c, kh, kw),
    # matching Conv2d(stride=PS) weight flattening; zero CLS/pad rows keep the patch matmul
    # result zero there (the class/pos embedding is added inside the kernel).
    # NOTE: the 8 zero rows cost ~12 KiB of extra bf16 DMA; kept to avoid an unaligned
    #       sublane concat inside the kernel.
    Hp = IMG // PS
    patches = (x.reshape(B, C, Hp, PS, Hp, PS)
                .transpose(0, 2, 4, 1, 3, 5)
                .reshape(B, PATCHES, K_IN))
    tokens = jnp.concatenate(
        [jnp.zeros((B, 1, K_IN), x.dtype),            # CLS slot (no pixels)
         patches,
         jnp.zeros((B, S_PAD - SEQ, K_IN), x.dtype)],  # pad rows
        axis=1).reshape(B * S_PAD, K_IN).astype(jnp.bfloat16)

    vspec = pl.BlockSpec(memory_space=pltpu.MemorySpace.VMEM)
    inputs = (tokens, params["patch_w"], params["wqkv"], params["wo"],
              params["w1"], params["w2"], params["vecs"], params["b1"],
              params["proj_w"], params["cls_w"], params["cls_b"])
    out = pl.pallas_call(
        _clip_fused_kernel,
        in_specs=[vspec] * len(inputs),
        out_specs=vspec,
        out_shape=jax.ShapeDtypeStruct((B, CLS_PAD), jnp.float32),
    )(*inputs)
    return out[:, :NUM_CLASSES]


clip_forward = jax.jit(_clip_forward)


# ----------------- deterministic parameter init (packed slabs) -----------------
def init_params(key):
    kit = iter(jax.random.split(key, 6 + 12 * NUM_LAYERS))

    def nrm(shape, std=0.02):
        return jax.random.normal(next(kit), shape, jnp.float32) * std

    patch_w = nrm((K_IN, D))
    class_emb = nrm((D,))
    pos_emb = nrm((SEQ, D))
    proj_w = nrm((D, PROJ))
    cls_w = nrm((PROJ, NUM_CLASSES))
    cls_b = nrm((NUM_CLASSES,))

    ones = jnp.ones((1, D), jnp.float32)
    zeros = jnp.zeros((1, D), jnp.float32)

    # packed D-wide vector slab (f32)
    cls_pos = jnp.concatenate(
        [(class_emb + pos_emb[0])[None, :], pos_emb[1:],
         jnp.zeros((S_PAD - SEQ, D), jnp.float32)], axis=0)           # (S_PAD, D)
    vec_rows = [cls_pos, ones, zeros, ones, zeros]                    # cls_pos, pre g/b, post g/b

    wqkv, wo, w1, w2, b1 = [], [], [], [], []
    for _ in range(NUM_LAYERS):
        wq, wk, wv = nrm((D, D)), nrm((D, D)), nrm((D, D))
        bq, bk, bv = nrm((D,)), nrm((D,)), nrm((D,))
        wo_l, bo = nrm((D, D)), nrm((D,))
        w1_l, b1_l = nrm((D, MLP)), nrm((MLP,))
        w2_l, b2 = nrm((MLP, D)), nrm((D,))
        # fold the attention SCALE into the q projection (weights + bias) once, at init
        wqkv.append(jnp.concatenate([wq * SCALE, wk, wv], axis=1))    # (D, 3D)
        wo.append(wo_l); w1.append(w1_l); w2.append(w2_l); b1.append(b1_l)
        vec_rows += [ones, zeros,                                     # ln1 gamma / beta
                     (bq * SCALE)[None, :], bk[None, :], bv[None, :], bo[None, :],
                     ones, zeros,                                     # ln2 gamma / beta
                     b2[None, :]]

    params = {
        "patch_w": patch_w.astype(jnp.bfloat16),                      # (K_IN, D)
        "wqkv": jnp.stack(wqkv).astype(jnp.bfloat16),                 # (L, D, 3D)
        "wo": jnp.stack(wo).astype(jnp.bfloat16),                     # (L, D, D)
        "w1": jnp.stack(w1).astype(jnp.bfloat16),                     # (L, D, MLP)
        "w2": jnp.stack(w2).astype(jnp.bfloat16),                     # (L, MLP, D)
        "vecs": jnp.concatenate(vec_rows, axis=0),                    # (N_VEC_ROWS, D) f32
        "b1": jnp.stack(b1),                                          # (L, MLP) f32
        "proj_w": proj_w.astype(jnp.bfloat16),                        # (D, PROJ)
        "cls_w": jnp.concatenate(
            [cls_w, jnp.zeros((PROJ, CLS_PAD - NUM_CLASSES), jnp.float32)],
            axis=1).astype(jnp.bfloat16),                             # (PROJ, 128) padded
        "cls_b": jnp.concatenate(
            [cls_b, jnp.zeros((CLS_PAD - NUM_CLASSES,), jnp.float32)])[None, :],  # (1, 128)
    }
    assert params["vecs"].shape == (N_VEC_ROWS, D)
    return params


if __name__ == "__main__":
    key = jax.random.PRNGKey(0)
    k_params, k_x = jax.random.split(key)
    params = init_params(k_params)
    x = jax.random.normal(k_x, (B, C, IMG, IMG), jnp.float32)   # NCHW, like PyTorch

    logits = jax.block_until_ready(clip_forward(x, params))
    assert logits.shape == (B, NUM_CLASSES) and logits.dtype == jnp.float32
    assert bool(jnp.all(jnp.isfinite(logits)))
    print("KERNEL_OK")
</pallas_src>

<mosaic_0001>
module attributes {stable_mosaic.version = 11 : i64} {
  func.func @_clip_fused_kernel(%arg0: memref<16x768xbf16, #tpu.memory_space<vmem>>, %arg1: memref<768x64xbf16, #tpu.memory_space<vmem>>, %arg2: memref<2x64x192xbf16, #tpu.memory_space<vmem>>, %arg3: memref<2x64x64xbf16, #tpu.memory_space<vmem>>, %arg4: memref<2x64x256xbf16, #tpu.memory_space<vmem>>, %arg5: memref<2x256x64xbf16, #tpu.memory_space<vmem>>, %arg6: memref<30x64xf32, #tpu.memory_space<vmem>>, %arg7: memref<2x256xf32, #tpu.memory_space<vmem>>, %arg8: memref<64x32xbf16, #tpu.memory_space<vmem>>, %arg9: memref<32x128xbf16, #tpu.memory_space<vmem>>, %arg10: memref<1x128xf32, #tpu.memory_space<vmem>>, %arg11: memref<2x128xf32, #tpu.memory_space<vmem>>) attributes {dimension_semantics = [], scalar_prefetch = 0 : i64, scratch_operands = 0 : i64, tpu.core_type = #tpu.core_type<tc>} {
    %c0 = arith.constant 0 : index
    %c0_0 = arith.constant 0 : index
    %0 = vector.load %arg0[%c0, %c0_0] : memref<16x768xbf16, #tpu.memory_space<vmem>>, vector<16x768xbf16>
    %c0_1 = arith.constant 0 : index
    %c0_2 = arith.constant 0 : index
    %1 = vector.load %arg1[%c0_1, %c0_2] : memref<768x64xbf16, #tpu.memory_space<vmem>>, vector<768x64xbf16>
    %cst = arith.constant dense<0.000000e+00> : vector<16x64xf32>
    %2 = tpu.matmul %0, %1, %cst {dimension_numbers = #tpu.dot_dimension_numbers<[1], [0], [0], [1], [0, 0, 1, 1], [], []>} : vector<16x768xbf16>, vector<768x64xbf16>, vector<16x64xf32> -> vector<16x64xf32>
    %c0_3 = arith.constant 0 : index
    %c0_4 = arith.constant 0 : index
    %3 = vector.load %arg6[%c0_3, %c0_4] : memref<30x64xf32, #tpu.memory_space<vmem>>, vector<8x64xf32>
    %4 = tpu.concatenate %3, %3 in 0 : vector<8x64xf32>, vector<8x64xf32> -> vector<16x64xf32>
    %5 = arith.addf %2, %4 : vector<16x64xf32>
    %c8 = arith.constant 8 : index
    %c0_5 = arith.constant 0 : index
    %6 = vector.load %arg6[%c8, %c0_5] : memref<30x64xf32, #tpu.memory_space<vmem>>, vector<1x64xf32>
    %c9 = arith.constant 9 : index
    %c0_6 = arith.constant 0 : index
    %7 = vector.load %arg6[%c9, %c0_6] : memref<30x64xf32, #tpu.memory_space<vmem>>, vector<1x64xf32>
    %cst_7 = arith.constant dense<0.000000e+00> : vector<16xf32>
    %8 = vector.multi_reduction <add>, %5, %cst_7 [1] : vector<16x64xf32> to vector<16xf32>
    %9 = vector.shape_cast %8 : vector<16xf32> to vector<16x1xf32>
    %cst_8 = arith.constant 6.400000e+01 : f32
    %10 = vector.broadcast %cst_8 : f32 to vector<16x1xf32>
    %11 = arith.divf %9, %10 : vector<16x1xf32>
    %12 = vector.broadcast %11 : vector<16x1xf32> to vector<16x64xf32>
    %13 = arith.subf %5, %12 : vector<16x64xf32>
    %14 = arith.mulf %13, %13 : vector<16x64xf32>
    %cst_9 = arith.constant dense<0.000000e+00> : vector<16xf32>
    %15 = vector.multi_reduction <add>, %14, %cst_9 [1] : vector<16x64xf32> to vector<16xf32>
    %16 = vector.shape_cast %15 : vector<16xf32> to vector<16x1xf32>
    %cst_10 = arith.constant 6.400000e+01 : f32
    %17 = vector.broadcast %cst_10 : f32 to vector<16x1xf32>
    %18 = arith.divf %16, %17 : vector<16x1xf32>
    %cst_11 = arith.constant 9.99999974E-6 : f32
    %19 = vector.broadcast %cst_11 : f32 to vector<16x1xf32>
    %20 = arith.addf %18, %19 : vector<16x1xf32>
    %21 = math.rsqrt %20 : vector<16x1xf32>
    %22 = vector.broadcast %21 : vector<16x1xf32> to vector<16x64xf32>
    %23 = arith.mulf %13, %22 : vector<16x64xf32>
    %24 = vector.broadcast %6 : vector<1x64xf32> to vector<16x64xf32>
    %25 = arith.mulf %23, %24 : vector<16x64xf32>
    %26 = vector.broadcast %7 : vector<1x64xf32> to vector<16x64xf32>
    %27 = arith.addf %25, %26 : vector<16x64xf32>
    %28 = tpu.iota {dimensions = array<i32: 0>} : vector<16x64xi32>
    %29 = tpu.iota {dimensions = array<i32: 1>} : vector<16x64xi32>
    %c3_i32 = arith.constant 3 : i32
    %30 = vector.broadcast %c3_i32 : i32 to vector<16x64xi32>
    %31 = arith.shrsi %28, %30 : vector<16x64xi32>
    %c5_i32 = arith.constant 5 : i32
    %32 = vector.broadcast %c5_i32 : i32 to vector<16x64xi32>
    %33 = arith.shrsi %29, %32 : vector<16x64xi32>
    %34 = arith.cmpi eq, %31, %33 : vector<16x64xi32>
    %c7_i32 = arith.constant 7 : i32
    %35 = vector.broadcast %c7_i32 : i32 to vector<16x64xi32>
    %36 = arith.andi %29, %35 : vector<16x64xi32>
    %c5_i32_12 = arith.constant 5 : i32
    %37 = vector.broadcast %c5_i32_12 : i32 to vector<16x64xi32>
    %38 = arith.cmpi slt, %36, %37 : vector<16x64xi32>
    %39 = arith.andi %34, %38 : vector<16x64xi1>
    %cst_13 = arith.constant 0.000000e+00 : f32
    %cst_14 = arith.constant -1.000000e+30 : f32
    %40 = vector.broadcast %cst_13 : f32 to vector<16x64xf32>
    %41 = vector.broadcast %cst_14 : f32 to vector<16x64xf32>
    %42 = arith.select %39, %40, %41 : vector<16x64xi1>, vector<16x64xf32>
    %43 = tpu.iota {dimensions = array<i32: 0>} : vector<64x64xi32>
    %44 = tpu.iota {dimensions = array<i32: 1>} : vector<64x64xi32>
    %c3_i32_15 = arith.constant 3 : i32
    %45 = vector.broadcast %c3_i32_15 : i32 to vector<64x64xi32>
    %46 = arith.shrsi %43, %45 : vector<64x64xi32>
    %c3_i32_16 = arith.constant 3 : i32
    %47 = vector.broadcast %c3_i32_16 : i32 to vector<64x64xi32>
    %48 = arith.andi %46, %47 : vector<64x64xi32>
    %c4_i32 = arith.constant 4 : i32
    %49 = vector.broadcast %c4_i32 : i32 to vector<64x64xi32>
    %50 = arith.shrsi %44, %49 : vector<64x64xi32>
    %51 = arith.cmpi eq, %48, %50 : vector<64x64xi32>
    %cst_17 = arith.constant 1.000000e+00 : f32
    %cst_18 = arith.constant 0.000000e+00 : f32
    %52 = vector.broadcast %cst_17 : f32 to vector<64x64xf32>
    %53 = vector.broadcast %cst_18 : f32 to vector<64x64xf32>
    %54 = arith.select %51, %52, %53 : vector<64x64xi1>, vector<64x64xf32>
    %55 = tpu.iota {dimensions = array<i32: 0>} : vector<64x64xi32>
    %56 = tpu.iota {dimensions = array<i32: 1>} : vector<64x64xi32>
    %c3_i32_19 = arith.constant 3 : i32
    %57 = vector.broadcast %c3_i32_19 : i32 to vector<64x64xi32>
    %58 = arith.shrsi %55, %57 : vector<64x64xi32>
    %c3_i32_20 = arith.constant 3 : i32
    %59 = vector.broadcast %c3_i32_20 : i32 to vector<64x64xi32>
    %60 = arith.shrsi %56, %59 : vector<64x64xi32>
    %61 = arith.cmpi eq, %58, %60 : vector<64x64xi32>
    %cst_21 = arith.constant 1.000000e+00 : f32
    %cst_22 = arith.constant 0.000000e+00 : f32
    %62 = vector.broadcast %cst_21 : f32 to vector<64x64xf32>
    %63 = vector.broadcast %cst_22 : f32 to vector<64x64xf32>
    %64 = arith.select %61, %62, %63 : vector<64x64xi1>, vector<64x64xf32>
    %65 = arith.truncf %64 : vector<64x64xf32> to vector<64x64xbf16>
    %c12 = arith.constant 12 : index
    %c0_23 = arith.constant 0 : index
    %66 = vector.load %arg6[%c12, %c0_23] : memref<30x64xf32, #tpu.memory_space<vmem>>, vector<1x64xf32>
    %c13 = arith.constant 13 : index
    %c0_24 = arith.constant 0 : index
    %67 = vector.load %arg6[%c13, %c0_24] : memref<30x64xf32, #tpu.memory_space<vmem>>, vector<1x64xf32>
    %cst_25 = arith.constant dense<0.000000e+00> : vector<16xf32>
    %68 = vector.multi_reduction <add>, %27, %cst_25 [1] : vector<16x64xf32> to vector<16xf32>
    %69 = vector.shape_cast %68 : vector<16xf32> to vector<16x1xf32>
    %cst_26 = arith.constant 6.400000e+01 : f32
    %70 = vector.broadcast %cst_26 : f32 to vector<16x1xf32>
    %71 = arith.divf %69, %70 : vector<16x1xf32>
    %72 = vector.broadcast %71 : vector<16x1xf32> to vector<16x64xf32>
    %73 = arith.subf %27, %72 : vector<16x64xf32>
    %74 = arith.mulf %73, %73 : vector<16x64xf32>
    %cst_27 = arith.constant dense<0.000000e+00> : vector<16xf32>
    %75 = vector.multi_reduction <add>, %74, %cst_27 [1] : vector<16x64xf32> to vector<16xf32>
    %76 = vector.shape_cast %75 : vector<16xf32> to vector<16x1xf32>
    %cst_28 = arith.constant 6.400000e+01 : f32
    %77 = vector.broadcast %cst_28 : f32 to vector<16x1xf32>
    %78 = arith.divf %76, %77 : vector<16x1xf32>
    %cst_29 = arith.constant 9.99999974E-6 : f32
    %79 = vector.broadcast %cst_29 : f32 to vector<16x1xf32>
    %80 = arith.addf %78, %79 : vector<16x1xf32>
    %81 = math.rsqrt %80 : vector<16x1xf32>
    %82 = vector.broadcast %81 : vector<16x1xf32> to vector<16x64xf32>
    %83 = arith.mulf %73, %82 : vector<16x64xf32>
    %84 = vector.broadcast %66 : vector<1x64xf32> to vector<16x64xf32>
    %85 = arith.mulf %83, %84 : vector<16x64xf32>
    %86 = vector.broadcast %67 : vector<1x64xf32> to vector<16x64xf32>
    %87 = arith.addf %85, %86 : vector<16x64xf32>
    %88 = arith.truncf %87 : vector<16x64xf32> to vector<16x64xbf16>
    %c0_30 = arith.constant 0 : index
    %c0_31 = arith.constant 0 : index
    %c0_32 = arith.constant 0 : index
    %89 = vector.load %arg2[%c0_30, %c0_31, %c0_32] : memref<2x64x192xbf16, #tpu.memory_space<vmem>>, vector<1x64x192xbf16>
    %90 = vector.shape_cast %89 : vector<1x64x192xbf16> to vector<64x192xbf16>
    %cst_33 = arith.constant dense<0.000000e+00> : vector<16x192xf32>
    %91 = tpu.matmul %88, %90, %cst_33 {dimension_numbers = #tpu.dot_dimension_numbers<[1], [0], [0], [1], [0, 0, 1, 1], [], []>} : vector<16x64xbf16>, vector<64x192xbf16>, vector<16x192xf32> -> vector<16x192xf32>
    %92 = vector.extract_strided_slice %91 {offsets = [0, 0], sizes = [16, 64], strides = [1, 1]} : vector<16x192xf32> to vector<16x64xf32>
    %c14 = arith.constant 14 : index
    %c0_34 = arith.constant 0 : index
    %93 = vector.load %arg6[%c14, %c0_34] : memref<30x64xf32, #tpu.memory_space<vmem>>, vector<1x64xf32>
    %94 = vector.broadcast %93 : vector<1x64xf32> to vector<16x64xf32>
    %95 = arith.addf %92, %94 : vector<16x64xf32>
    %96 = vector.extract_strided_slice %91 {offsets = [0, 64], sizes = [16, 64], strides = [1, 1]} : vector<16x192xf32> to vector<16x64xf32>
    %c15 = arith.constant 15 : index
    %c0_35 = arith.constant 0 : index
    %97 = vector.load %arg6[%c15, %c0_35] : memref<30x64xf32, #tpu.memory_space<vmem>>, vector<1x64xf32>
    %98 = vector.broadcast %97 : vector<1x64xf32> to vector<16x64xf32>
    %99 = arith.addf %96, %98 : vector<16x64xf32>
    %100 = vector.extract_strided_slice %91 {offsets = [0, 128], sizes = [16, 64], strides = [1, 1]} : vector<16x192xf32> to vector<16x64xf32>
    %c16 = arith.constant 16 : index
    %c0_36 = arith.constant 0 : index
    %101 = vector.load %arg6[%c16, %c0_36] : memref<30x64xf32, #tpu.memory_space<vmem>>, vector<1x64xf32>
    %102 = vector.broadcast %101 : vector<1x64xf32> to vector<16x64xf32>
    %103 = arith.addf %100, %102 : vector<16x64xf32>
    %104 = vector.extract_strided_slice %99 {offsets = [0, 0], sizes = [8, 64], strides = [1, 1]} : vector<16x64xf32> to vector<8x64xf32>
    %105 = vector.extract_strided_slice %99 {offsets = [0, 0], sizes = [8, 64], strides = [1, 1]} : vector<16x64xf32> to vector<8x64xf32>
    %106 = vector.extract_strided_slice %99 {offsets = [0, 0], sizes = [8, 64], strides = [1, 1]} : vector<16x64xf32> to vector<8x64xf32>
    %107 = vector.extract_strided_slice %99 {offsets = [0, 0], sizes = [8, 64], strides = [1, 1]} : vector<16x64xf32> to vector<8x64xf32>
    %108 = vector.extract_strided_slice %99 {offsets = [8, 0], sizes = [8, 64], strides = [1, 1]} : vector<16x64xf32> to vector<8x64xf32>
    %109 = vector.extract_strided_slice %99 {offsets = [8, 0], sizes = [8, 64], strides = [1, 1]} : vector<16x64xf32> to vector<8x64xf32>
    %110 = vector.extract_strided_slice %99 {offsets = [8, 0], sizes = [8, 64], strides = [1, 1]} : vector<16x64xf32> to vector<8x64xf32>
    %111 = vector.extract_strided_slice %99 {offsets = [8, 0], sizes = [8, 64], strides = [1, 1]} : vector<16x64xf32> to vector<8x64xf32>
    %112 = tpu.concatenate %104, %105, %106, %107, %108, %109, %110, %111 in 0 : vector<8x64xf32>, vector<8x64xf32>, vector<8x64xf32>, vector<8x64xf32>, vector<8x64xf32>, vector<8x64xf32>, vector<8x64xf32>, vector<8x64xf32> -> vector<64x64xf32>
    %113 = vector.extract_strided_slice %103 {offsets = [0, 0], sizes = [8, 64], strides = [1, 1]} : vector<16x64xf32> to vector<8x64xf32>
    %114 = vector.extract_strided_slice %103 {offsets = [0, 0], sizes = [8, 64], strides = [1, 1]} : vector<16x64xf32> to vector<8x64xf32>
    %115 = vector.extract_strided_slice %103 {offsets = [0, 0], sizes = [8, 64], strides = [1, 1]} : vector<16x64xf32> to vector<8x64xf32>
    %116 = vector.extract_strided_slice %103 {offsets = [0, 0], sizes = [8, 64], strides = [1, 1]} : vector<16x64xf32> to vector<8x64xf32>
    %117 = vector.extract_strided_slice %103 {offsets = [8, 0], sizes = [8, 64], strides = [1, 1]} : vector<16x64xf32> to vector<8x64xf32>
    %118 = vector.extract_strided_slice %103 {offsets = [8, 0], sizes = [8, 64], strides = [1, 1]} : vector<16x64xf32> to vector<8x64xf32>
    %119 = vector.extract_strided_slice %103 {offsets = [8, 0], sizes = [8, 64], strides = [1, 1]} : vector<16x64xf32> to vector<8x64xf32>
    %120 = vector.extract_strided_slice %103 {offsets = [8, 0], sizes = [8, 64], strides = [1, 1]} : vector<16x64xf32> to vector<8x64xf32>
    %121 = tpu.concatenate %113, %114, %115, %116, %117, %118, %119, %120 in 0 : vector<8x64xf32>, vector<8x64xf32>, vector<8x64xf32>, vector<8x64xf32>, vector<8x64xf32>, vector<8x64xf32>, vector<8x64xf32>, vector<8x64xf32> -> vector<64x64xf32>
    %122 = arith.mulf %112, %54 : vector<64x64xf32>
    %123 = arith.truncf %122 : vector<64x64xf32> to vector<64x64xbf16>
    %124 = arith.mulf %121, %54 : vector<64x64xf32>
    %125 = arith.truncf %124 : vector<64x64xf32> to vector<64x64xbf16>
    %126 = arith.truncf %95 : vector<16x64xf32> to vector<16x64xbf16>
    "tpu.trace_start"() <{level = 10 : i32, message = "qd,kd->qk"}> : () -> ()
    %cst_37 = arith.constant dense<0.000000e+00> : vector<16x64xf32>
    %127 = tpu.matmul %126, %123, %cst_37 {dimension_numbers = #tpu.dot_dimension_numbers<[1], [1], [0], [0], [0, 0, 1, 0], [], []>} : vector<16x64xbf16>, vector<64x64xbf16>, vector<16x64xf32> -> vector<16x64xf32>
    "tpu.trace_stop"() : () -> ()
    %128 = arith.addf %127, %42 : vector<16x64xf32>
    %cst_38 = arith.constant dense<0xFF800000> : vector<16xf32>
    %129 = vector.multi_reduction <maximumf>, %128, %cst_38 [1] : vector<16x64xf32> to vector<16xf32>
    %130 = vector.shape_cast %129 : vector<16xf32> to vector<16x1xf32>
    %131 = vector.broadcast %130 : vector<16x1xf32> to vector<16x64xf32>
    %132 = arith.subf %128, %131 : vector<16x64xf32>
    %133 = math.exp %132 : vector<16x64xf32>
    %134 = arith.truncf %133 : vector<16x64xf32> to vector<16x64xbf16>
    %cst_39 = arith.constant dense<0.000000e+00> : vector<16x64xf32>
    %135 = tpu.matmul %134, %65, %cst_39 {dimension_numbers = #tpu.dot_dimension_numbers<[1], [0], [0], [1], [0, 0, 1, 1], [], []>} : vector<16x64xbf16>, vector<64x64xbf16>, vector<16x64xf32> -> vector<16x64xf32>
    %cst_40 = arith.constant 1.000000e-30 : f32
    %136 = vector.broadcast %cst_40 : f32 to vector<16x64xf32>
    %137 = arith.addf %135, %136 : vector<16x64xf32>
    %138 = tpu.reciprocal %137 {approx = true} : vector<16x64xf32> -> vector<16x64xf32>
    %139 = arith.mulf %133, %138 : vector<16x64xf32>
    %140 = arith.truncf %139 : vector<16x64xf32> to vector<16x64xbf16>
    %cst_41 = arith.constant dense<0.000000e+00> : vector<16x64xf32>
    %141 = tpu.matmul %140, %125, %cst_41 {dimension_numbers = #tpu.dot_dimension_numbers<[1], [0], [0], [1], [0, 0, 1, 1], [], []>} : vector<16x64xbf16>, vector<64x64xbf16>, vector<16x64xf32> -> vector<16x64xf32>
    %142 = arith.truncf %141 : vector<16x64xf32> to vector<16x64xbf16>
    %c0_42 = arith.constant 0 : index
    %c0_43 = arith.constant 0 : index
    %c0_44 = arith.constant 0 : index
    %143 = vector.load %arg3[%c0_42, %c0_43, %c0_44] : memref<2x64x64xbf16, #tpu.memory_space<vmem>>, vector<1x64x64xbf16>
    %144 = vector.shape_cast %143 : vector<1x64x64xbf16> to vector<64x64xbf16>
    %cst_45 = arith.constant dense<0.000000e+00> : vector<16x64xf32>
    %145 = tpu.matmul %142, %144, %cst_45 {dimension_numbers = #tpu.dot_dimension_numbers<[1], [0], [0], [1], [0, 0, 1, 1], [], []>} : vector<16x64xbf16>, vector<64x64xbf16>, vector<16x64xf32> -> vector<16x64xf32>
    %c17 = arith.constant 17 : index
    %c0_46 = arith.constant 0 : index
    %146 = vector.load %arg6[%c17, %c0_46] : memref<30x64xf32, #tpu.memory_space<vmem>>, vector<1x64xf32>
    %147 = vector.broadcast %146 : vector<1x64xf32> to vector<16x64xf32>
    %148 = arith.addf %145, %147 : vector<16x64xf32>
    %149 = arith.addf %27, %148 : vector<16x64xf32>
    %c18 = arith.constant 18 : index
    %c0_47 = arith.constant 0 : index
    %150 = vector.load %arg6[%c18, %c0_47] : memref<30x64xf32, #tpu.memory_space<vmem>>, vector<1x64xf32>
    %c19 = arith.constant 19 : index
    %c0_48 = arith.constant 0 : index
    %151 = vector.load %arg6[%c19, %c0_48] : memref<30x64xf32, #tpu.memory_space<vmem>>, vector<1x64xf32>
    %cst_49 = arith.constant dense<0.000000e+00> : vector<16xf32>
    %152 = vector.multi_reduction <add>, %149, %cst_49 [1] : vector<16x64xf32> to vector<16xf32>
    %153 = vector.shape_cast %152 : vector<16xf32> to vector<16x1xf32>
    %cst_50 = arith.constant 6.400000e+01 : f32
    %154 = vector.broadcast %cst_50 : f32 to vector<16x1xf32>
    %155 = arith.divf %153, %154 : vector<16x1xf32>
    %156 = vector.broadcast %155 : vector<16x1xf32> to vector<16x64xf32>
    %157 = arith.subf %149, %156 : vector<16x64xf32>
    %158 = arith.mulf %157, %157 : vector<16x64xf32>
    %cst_51 = arith.constant dense<0.000000e+00> : vector<16xf32>
    %159 = vector.multi_reduction <add>, %158, %cst_51 [1] : vector<16x64xf32> to vector<16xf32>
    %160 = vector.shape_cast %159 : vector<16xf32> to vector<16x1xf32>
    %cst_52 = arith.constant 6.400000e+01 : f32
    %161 = vector.broadcast %cst_52 : f32 to vector<16x1xf32>
    %162 = arith.divf %160, %161 : vector<16x1xf32>
    %cst_53 = arith.constant 9.99999974E-6 : f32
    %163 = vector.broadcast %cst_53 : f32 to vector<16x1xf32>
    %164 = arith.addf %162, %163 : vector<16x1xf32>
    %165 = math.rsqrt %164 : vector<16x1xf32>
    %166 = vector.broadcast %165 : vector<16x1xf32> to vector<16x64xf32>
    %167 = arith.mulf %157, %166 : vector<16x64xf32>
    %168 = vector.broadcast %150 : vector<1x64xf32> to vector<16x64xf32>
    %169 = arith.mulf %167, %168 : vector<16x64xf32>
    %170 = vector.broadcast %151 : vector<1x64xf32> to vector<16x64xf32>
    %171 = arith.addf %169, %170 : vector<16x64xf32>
    %172 = arith.truncf %171 : vector<16x64xf32> to vector<16x64xbf16>
    %c0_54 = arith.constant 0 : index
    %c0_55 = arith.constant 0 : index
    %c0_56 = arith.constant 0 : index
    %173 = vector.load %arg4[%c0_54, %c0_55, %c0_56] : memref<2x64x256xbf16, #tpu.memory_space<vmem>>, vector<1x64x256xbf16>
    %174 = vector.shape_cast %173 : vector<1x64x256xbf16> to vector<64x256xbf16>
    %cst_57 = arith.constant dense<0.000000e+00> : vector<16x256xf32>
    %175 = tpu.matmul %172, %174, %cst_57 {dimension_numbers = #tpu.dot_dimension_numbers<[1], [0], [0], [1], [0, 0, 1, 1], [], []>} : vector<16x64xbf16>, vector<64x256xbf16>, vector<16x256xf32> -> vector<16x256xf32>
    %c0_58 = arith.constant 0 : index
    %c0_59 = arith.constant 0 : index
    %176 = vector.load %arg7[%c0_58, %c0_59] : memref<2x256xf32, #tpu.memory_space<vmem>>, vector<1x256xf32>
    %177 = vector.broadcast %176 : vector<1x256xf32> to vector<16x256xf32>
    %178 = arith.addf %175, %177 : vector<16x256xf32>
    %cst_60 = arith.constant -1.702000e+00 : f32
    %179 = vector.broadcast %cst_60 : f32 to vector<16x256xf32>
    %180 = arith.mulf %179, %178 : vector<16x256xf32>
    %181 = math.exp %180 : vector<16x256xf32>
    %cst_61 = arith.constant 1.000000e+00 : f32
    %182 = vector.broadcast %cst_61 : f32 to vector<16x256xf32>
    %183 = arith.addf %182, %181 : vector<16x256xf32>
    %cst_62 = arith.constant 1.000000e+00 : f32
    %184 = vector.broadcast %cst_62 : f32 to vector<16x256xf32>
    %185 = arith.divf %184, %183 : vector<16x256xf32>
    %186 = arith.mulf %178, %185 : vector<16x256xf32>
    %187 = arith.truncf %186 : vector<16x256xf32> to vector<16x256xbf16>
    %c0_63 = arith.constant 0 : index
    %c0_64 = arith.constant 0 : index
    %c0_65 = arith.constant 0 : index
    %188 = vector.load %arg5[%c0_63, %c0_64, %c0_65] : memref<2x256x64xbf16, #tpu.memory_space<vmem>>, vector<1x256x64xbf16>
    %189 = vector.shape_cast %188 : vector<1x256x64xbf16> to vector<256x64xbf16>
    %cst_66 = arith.constant dense<0.000000e+00> : vector<16x64xf32>
    %190 = tpu.matmul %187, %189, %cst_66 {dimension_numbers = #tpu.dot_dimension_numbers<[1], [0], [0], [1], [0, 0, 1, 1], [], []>} : vector<16x256xbf16>, vector<256x64xbf16>, vector<16x64xf32> -> vector<16x64xf32>
    %191 = arith.addf %149, %190 : vector<16x64xf32>
    %c20 = arith.constant 20 : index
    %c0_67 = arith.constant 0 : index
    %192 = vector.load %arg6[%c20, %c0_67] : memref<30x64xf32, #tpu.memory_space<vmem>>, vector<1x64xf32>
    %193 = vector.broadcast %192 : vector<1x64xf32> to vector<16x64xf32>
    %194 = arith.addf %191, %193 : vector<16x64xf32>
    %c21 = arith.constant 21 : index
    %c0_68 = arith.constant 0 : index
    %195 = vector.load %arg6[%c21, %c0_68] : memref<30x64xf32, #tpu.memory_space<vmem>>, vector<1x64xf32>
    %c22 = arith.constant 22 : index
    %c0_69 = arith.constant 0 : index
    %196 = vector.load %arg6[%c22, %c0_69] : memref<30x64xf32, #tpu.memory_space<vmem>>, vector<1x64xf32>
    %cst_70 = arith.constant dense<0.000000e+00> : vector<16xf32>
    %197 = vector.multi_reduction <add>, %194, %cst_70 [1] : vector<16x64xf32> to vector<16xf32>
    %198 = vector.shape_cast %197 : vector<16xf32> to vector<16x1xf32>
    %cst_71 = arith.constant 6.400000e+01 : f32
    %199 = vector.broadcast %cst_71 : f32 to vector<16x1xf32>
    %200 = arith.divf %198, %199 : vector<16x1xf32>
    %201 = vector.broadcast %200 : vector<16x1xf32> to vector<16x64xf32>
    %202 = arith.subf %194, %201 : vector<16x64xf32>
    %203 = arith.mulf %202, %202 : vector<16x64xf32>
    %cst_72 = arith.constant dense<0.000000e+00> : vector<16xf32>
    %204 = vector.multi_reduction <add>, %203, %cst_72 [1] : vector<16x64xf32> to vector<16xf32>
    %205 = vector.shape_cast %204 : vector<16xf32> to vector<16x1xf32>
    %cst_73 = arith.constant 6.400000e+01 : f32
    %206 = vector.broadcast %cst_73 : f32 to vector<16x1xf32>
    %207 = arith.divf %205, %206 : vector<16x1xf32>
    %cst_74 = arith.constant 9.99999974E-6 : f32
    %208 = vector.broadcast %cst_74 : f32 to vector<16x1xf32>
    %209 = arith.addf %207, %208 : vector<16x1xf32>
    %210 = math.rsqrt %209 : vector<16x1xf32>
    %211 = vector.broadcast %210 : vector<16x1xf32> to vector<16x64xf32>
    %212 = arith.mulf %202, %211 : vector<16x64xf32>
    %213 = vector.broadcast %195 : vector<1x64xf32> to vector<16x64xf32>
    %214 = arith.mulf %212, %213 : vector<16x64xf32>
    %215 = vector.broadcast %196 : vector<1x64xf32> to vector<16x64xf32>
    %216 = arith.addf %214, %215 : vector<16x64xf32>
    %217 = arith.truncf %216 : vector<16x64xf32> to vector<16x64xbf16>
    %c1 = arith.constant 1 : index
    %c0_75 = arith.constant 0 : index
    %c0_76 = arith.constant 0 : index
    %218 = vector.load %arg2[%c1, %c0_75, %c0_76] : memref<2x64x192xbf16, #tpu.memory_space<vmem>>, vector<1x64x192xbf16>
    %219 = vector.shape_cast %218 : vector<1x64x192xbf16> to vector<64x192xbf16>
    %cst_77 = arith.constant dense<0.000000e+00> : vector<16x192xf32>
    %220 = tpu.matmul %217, %219, %cst_77 {dimension_numbers = #tpu.dot_dimension_numbers<[1], [0], [0], [1], [0, 0, 1, 1], [], []>} : vector<16x64xbf16>, vector<64x192xbf16>, vector<16x192xf32> -> vector<16x192xf32>
    %221 = vector.extract_strided_slice %220 {offsets = [0, 0], sizes = [16, 64], strides = [1, 1]} : vector<16x192xf32> to vector<16x64xf32>
    %c23 = arith.constant 23 : index
    %c0_78 = arith.constant 0 : index
    %222 = vector.load %arg6[%c23, %c0_78] : memref<30x64xf32, #tpu.memory_space<vmem>>, vector<1x64xf32>
    %223 = vector.broadcast %222 : vector<1x64xf32> to vector<16x64xf32>
    %224 = arith.addf %221, %223 : vector<16x64xf32>
    %225 = vector.extract_strided_slice %220 {offsets = [0, 64], sizes = [16, 64], strides = [1, 1]} : vector<16x192xf32> to vector<16x64xf32>
    %c24 = arith.constant 24 : index
    %c0_79 = arith.constant 0 : index
    %226 = vector.load %arg6[%c24, %c0_79] : memref<30x64xf32, #tpu.memory_space<vmem>>, vector<1x64xf32>
    %227 = vector.broadcast %226 : vector<1x64xf32> to vector<16x64xf32>
    %228 = arith.addf %225, %227 : vector<16x64xf32>
    %229 = vector.extract_strided_slice %220 {offsets = [0, 128], sizes = [16, 64], strides = [1, 1]} : vector<16x192xf32> to vector<16x64xf32>
    %c25 = arith.constant 25 : index
    %c0_80 = arith.constant 0 : index
    %230 = vector.load %arg6[%c25, %c0_80] : memref<30x64xf32, #tpu.memory_space<vmem>>, vector<1x64xf32>
    %231 = vector.broadcast %230 : vector<1x64xf32> to vector<16x64xf32>
    %232 = arith.addf %229, %231 : vector<16x64xf32>
    %233 = vector.extract_strided_slice %228 {offsets = [0, 0], sizes = [8, 64], strides = [1, 1]} : vector<16x64xf32> to vector<8x64xf32>
    %234 = vector.extract_strided_slice %228 {offsets = [0, 0], sizes = [8, 64], strides = [1, 1]} : vector<16x64xf32> to vector<8x64xf32>
    %235 = vector.extract_strided_slice %228 {offsets = [0, 0], sizes = [8, 64], strides = [1, 1]} : vector<16x64xf32> to vector<8x64xf32>
    %236 = vector.extract_strided_slice %228 {offsets = [0, 0], sizes = [8, 64], strides = [1, 1]} : vector<16x64xf32> to vector<8x64xf32>
    %237 = vector.extract_strided_slice %228 {offsets = [8, 0], sizes = [8, 64], strides = [1, 1]} : vector<16x64xf32> to vector<8x64xf32>
    %238 = vector.extract_strided_slice %228 {offsets = [8, 0], sizes = [8, 64], strides = [1, 1]} : vector<16x64xf32> to vector<8x64xf32>
    %239 = vector.extract_strided_slice %228 {offsets = [8, 0], sizes = [8, 64], strides = [1, 1]} : vector<16x64xf32> to vector<8x64xf32>
    %240 = vector.extract_strided_slice %228 {offsets = [8, 0], sizes = [8, 64], strides = [1, 1]} : vector<16x64xf32> to vector<8x64xf32>
    %241 = tpu.concatenate %233, %234, %235, %236, %237, %238, %239, %240 in 0 : vector<8x64xf32>, vector<8x64xf32>, vector<8x64xf32>, vector<8x64xf32>, vector<8x64xf32>, vector<8x64xf32>, vector<8x64xf32>, vector<8x64xf32> -> vector<64x64xf32>
    %242 = vector.extract_strided_slice %232 {offsets = [0, 0], sizes = [8, 64], strides = [1, 1]} : vector<16x64xf32> to vector<8x64xf32>
    %243 = vector.extract_strided_slice %232 {offsets = [0, 0], sizes = [8, 64], strides = [1, 1]} : vector<16x64xf32> to vector<8x64xf32>
    %244 = vector.extract_strided_slice %232 {offsets = [0, 0], sizes = [8, 64], strides = [1, 1]} : vector<16x64xf32> to vector<8x64xf32>
    %245 = vector.extract_strided_slice %232 {offsets = [0, 0], sizes = [8, 64], strides = [1, 1]} : vector<16x64xf32> to vector<8x64xf32>
    %246 = vector.extract_strided_slice %232 {offsets = [8, 0], sizes = [8, 64], strides = [1, 1]} : vector<16x64xf32> to vector<8x64xf32>
    %247 = vector.extract_strided_slice %232 {offsets = [8, 0], sizes = [8, 64], strides = [1, 1]} : vector<16x64xf32> to vector<8x64xf32>
    %248 = vector.extract_strided_slice %232 {offsets = [8, 0], sizes = [8, 64], strides = [1, 1]} : vector<16x64xf32> to vector<8x64xf32>
    %249 = vector.extract_strided_slice %232 {offsets = [8, 0], sizes = [8, 64], strides = [1, 1]} : vector<16x64xf32> to vector<8x64xf32>
    %250 = tpu.concatenate %242, %243, %244, %245, %246, %247, %248, %249 in 0 : vector<8x64xf32>, vector<8x64xf32>, vector<8x64xf32>, vector<8x64xf32>, vector<8x64xf32>, vector<8x64xf32>, vector<8x64xf32>, vector<8x64xf32> -> vector<64x64xf32>
    %251 = arith.mulf %241, %54 : vector<64x64xf32>
    %252 = arith.truncf %251 : vector<64x64xf32> to vector<64x64xbf16>
    %253 = arith.mulf %250, %54 : vector<64x64xf32>
    %254 = arith.truncf %253 : vector<64x64xf32> to vector<64x64xbf16>
    %255 = arith.truncf %224 : vector<16x64xf32> to vector<16x64xbf16>
    "tpu.trace_start"() <{level = 10 : i32, message = "qd,kd->qk"}> : () -> ()
    %cst_81 = arith.constant dense<0.000000e+00> : vector<16x64xf32>
    %256 = tpu.matmul %255, %252, %cst_81 {dimension_numbers = #tpu.dot_dimension_numbers<[1], [1], [0], [0], [0, 0, 1, 0], [], []>} : vector<16x64xbf16>, vector<64x64xbf16>, vector<16x64xf32> -> vector<16x64xf32>
    "tpu.trace_stop"() : () -> ()
    %257 = arith.addf %256, %42 : vector<16x64xf32>
    %cst_82 = arith.constant dense<0xFF800000> : vector<16xf32>
    %258 = vector.multi_reduction <maximumf>, %257, %cst_82 [1] : vector<16x64xf32> to vector<16xf32>
    %259 = vector.shape_cast %258 : vector<16xf32> to vector<16x1xf32>
    %260 = vector.broadcast %259 : vector<16x1xf32> to vector<16x64xf32>
    %261 = arith.subf %257, %260 : vector<16x64xf32>
    %262 = math.exp %261 : vector<16x64xf32>
    %263 = arith.truncf %262 : vector<16x64xf32> to vector<16x64xbf16>
    %cst_83 = arith.constant dense<0.000000e+00> : vector<16x64xf32>
    %264 = tpu.matmul %263, %65, %cst_83 {dimension_numbers = #tpu.dot_dimension_numbers<[1], [0], [0], [1], [0, 0, 1, 1], [], []>} : vector<16x64xbf16>, vector<64x64xbf16>, vector<16x64xf32> -> vector<16x64xf32>
    %cst_84 = arith.constant 1.000000e-30 : f32
    %265 = vector.broadcast %cst_84 : f32 to vector<16x64xf32>
    %266 = arith.addf %264, %265 : vector<16x64xf32>
    %267 = tpu.reciprocal %266 {approx = true} : vector<16x64xf32> -> vector<16x64xf32>
    %268 = arith.mulf %262, %267 : vector<16x64xf32>
    %269 = arith.truncf %268 : vector<16x64xf32> to vector<16x64xbf16>
    %cst_85 = arith.constant dense<0.000000e+00> : vector<16x64xf32>
    %270 = tpu.matmul %269, %254, %cst_85 {dimension_numbers = #tpu.dot_dimension_numbers<[1], [0], [0], [1], [0, 0, 1, 1], [], []>} : vector<16x64xbf16>, vector<64x64xbf16>, vector<16x64xf32> -> vector<16x64xf32>
    %271 = arith.truncf %270 : vector<16x64xf32> to vector<16x64xbf16>
    %c1_86 = arith.constant 1 : index
    %c0_87 = arith.constant 0 : index
    %c0_88 = arith.constant 0 : index
    %272 = vector.load %arg3[%c1_86, %c0_87, %c0_88] : memref<2x64x64xbf16, #tpu.memory_space<vmem>>, vector<1x64x64xbf16>
    %273 = vector.shape_cast %272 : vector<1x64x64xbf16> to vector<64x64xbf16>
    %cst_89 = arith.constant dense<0.000000e+00> : vector<16x64xf32>
    %274 = tpu.matmul %271, %273, %cst_89 {dimension_numbers = #tpu.dot_dimension_numbers<[1], [0], [0], [1], [0, 0, 1, 1], [], []>} : vector<16x64xbf16>, vector<64x64xbf16>, vector<16x64xf32> -> vector<16x64xf32>
    %c26 = arith.constant 26 : index
    %c0_90 = arith.constant 0 : index
    %275 = vector.load %arg6[%c26, %c0_90] : memref<30x64xf32, #tpu.memory_space<vmem>>, vector<1x64xf32>
    %276 = vector.broadcast %275 : vector<1x64xf32> to vector<16x64xf32>
    %277 = arith.addf %274, %276 : vector<16x64xf32>
    %278 = arith.addf %194, %277 : vector<16x64xf32>
    %c27 = arith.constant 27 : index
    %c0_91 = arith.constant 0 : index
    %279 = vector.load %arg6[%c27, %c0_91] : memref<30x64xf32, #tpu.memory_space<vmem>>, vector<1x64xf32>
    %c28 = arith.constant 28 : index
    %c0_92 = arith.constant 0 : index
    %280 = vector.load %arg6[%c28, %c0_92] : memref<30x64xf32, #tpu.memory_space<vmem>>, vector<1x64xf32>
    %cst_93 = arith.constant dense<0.000000e+00> : vector<16xf32>
    %281 = vector.multi_reduction <add>, %278, %cst_93 [1] : vector<16x64xf32> to vector<16xf32>
    %282 = vector.shape_cast %281 : vector<16xf32> to vector<16x1xf32>
    %cst_94 = arith.constant 6.400000e+01 : f32
    %283 = vector.broadcast %cst_94 : f32 to vector<16x1xf32>
    %284 = arith.divf %282, %283 : vector<16x1xf32>
    %285 = vector.broadcast %284 : vector<16x1xf32> to vector<16x64xf32>
    %286 = arith.subf %278, %285 : vector<16x64xf32>
    %287 = arith.mulf %286, %286 : vector<16x64xf32>
    %cst_95 = arith.constant dense<0.000000e+00> : vector<16xf32>
    %288 = vector.multi_reduction <add>, %287, %cst_95 [1] : vector<16x64xf32> to vector<16xf32>
    %289 = vector.shape_cast %288 : vector<16xf32> to vector<16x1xf32>
    %cst_96 = arith.constant 6.400000e+01 : f32
    %290 = vector.broadcast %cst_96 : f32 to vector<16x1xf32>
    %291 = arith.divf %289, %290 : vector<16x1xf32>
    %cst_97 = arith.constant 9.99999974E-6 : f32
    %292 = vector.broadcast %cst_97 : f32 to vector<16x1xf32>
    %293 = arith.addf %291, %292 : vector<16x1xf32>
    %294 = math.rsqrt %293 : vector<16x1xf32>
    %295 = vector.broadcast %294 : vector<16x1xf32> to vector<16x64xf32>
    %296 = arith.mulf %286, %295 : vector<16x64xf32>
    %297 = vector.broadcast %279 : vector<1x64xf32> to vector<16x64xf32>
    %298 = arith.mulf %296, %297 : vector<16x64xf32>
    %299 = vector.broadcast %280 : vector<1x64xf32> to vector<16x64xf32>
    %300 = arith.addf %298, %299 : vector<16x64xf32>
    %301 = arith.truncf %300 : vector<16x64xf32> to vector<16x64xbf16>
    %c1_98 = arith.constant 1 : index
    %c0_99 = arith.constant 0 : index
    %c0_100 = arith.constant 0 : index
    %302 = vector.load %arg4[%c1_98, %c0_99, %c0_100] : memref<2x64x256xbf16, #tpu.memory_space<vmem>>, vector<1x64x256xbf16>
    %303 = vector.shape_cast %302 : vector<1x64x256xbf16> to vector<64x256xbf16>
    %cst_101 = arith.constant dense<0.000000e+00> : vector<16x256xf32>
    %304 = tpu.matmul %301, %303, %cst_101 {dimension_numbers = #tpu.dot_dimension_numbers<[1], [0], [0], [1], [0, 0, 1, 1], [], []>} : vector<16x64xbf16>, vector<64x256xbf16>, vector<16x256xf32> -> vector<16x256xf32>
    %c1_102 = arith.constant 1 : index
    %c0_103 = arith.constant 0 : index
    %305 = vector.load %arg7[%c1_102, %c0_103] : memref<2x256xf32, #tpu.memory_space<vmem>>, vector<1x256xf32>
    %306 = vector.broadcast %305 : vector<1x256xf32> to vector<16x256xf32>
    %307 = arith.addf %304, %306 : vector<16x256xf32>
    %cst_104 = arith.constant -1.702000e+00 : f32
    %308 = vector.broadcast %cst_104 : f32 to vector<16x256xf32>
    %309 = arith.mulf %308, %307 : vector<16x256xf32>
    %310 = math.exp %309 : vector<16x256xf32>
    %cst_105 = arith.constant 1.000000e+00 : f32
    %311 = vector.broadcast %cst_105 : f32 to vector<16x256xf32>
    %312 = arith.addf %311, %310 : vector<16x256xf32>
    %cst_106 = arith.constant 1.000000e+00 : f32
    %313 = vector.broadcast %cst_106 : f32 to vector<16x256xf32>
    %314 = arith.divf %313, %312 : vector<16x256xf32>
    %315 = arith.mulf %307, %314 : vector<16x256xf32>
    %316 = arith.truncf %315 : vector<16x256xf32> to vector<16x256xbf16>
    %c1_107 = arith.constant 1 : index
    %c0_108 = arith.constant 0 : index
    %c0_109 = arith.constant 0 : index
    %317 = vector.load %arg5[%c1_107, %c0_108, %c0_109] : memref<2x256x64xbf16, #tpu.memory_space<vmem>>, vector<1x256x64xbf16>
    %318 = vector.shape_cast %317 : vector<1x256x64xbf16> to vector<256x64xbf16>
    %cst_110 = arith.constant dense<0.000000e+00> : vector<16x64xf32>
    %319 = tpu.matmul %316, %318, %cst_110 {dimension_numbers = #tpu.dot_dimension_numbers<[1], [0], [0], [1], [0, 0, 1, 1], [], []>} : vector<16x256xbf16>, vector<256x64xbf16>, vector<16x64xf32> -> vector<16x64xf32>
    %320 = arith.addf %278, %319 : vector<16x64xf32>
    %c29 = arith.constant 29 : index
    %c0_111 = arith.constant 0 : index
    %321 = vector.load %arg6[%c29, %c0_111] : memref<30x64xf32, #tpu.memory_space<vmem>>, vector<1x64xf32>
    %322 = vector.broadcast %321 : vector<1x64xf32> to vector<16x64xf32>
    %323 = arith.addf %320, %322 : vector<16x64xf32>
    %324 = vector.extract_strided_slice %323 {offsets = [0, 0], sizes = [1, 64], strides = [1, 1]} : vector<16x64xf32> to vector<1x64xf32>
    %325 = vector.extract_strided_slice %323 {offsets = [8, 0], sizes = [1, 64], strides = [1, 1]} : vector<16x64xf32> to vector<1x64xf32>
    %326 = tpu.concatenate %324, %325 in 0 : vector<1x64xf32>, vector<1x64xf32> -> vector<2x64xf32>
    %c10 = arith.constant 10 : index
    %c0_112 = arith.constant 0 : index
    %327 = vector.load %arg6[%c10, %c0_112] : memref<30x64xf32, #tpu.memory_space<vmem>>, vector<1x64xf32>
    %c11 = arith.constant 11 : index
    %c0_113 = arith.constant 0 : index
    %328 = vector.load %arg6[%c11, %c0_113] : memref<30x64xf32, #tpu.memory_space<vmem>>, vector<1x64xf32>
    %cst_114 = arith.constant dense<0.000000e+00> : vector<2xf32>
    %329 = vector.multi_reduction <add>, %326, %cst_114 [1] : vector<2x64xf32> to vector<2xf32>
    %330 = vector.shape_cast %329 : vector<2xf32> to vector<2x1xf32>
    %cst_115 = arith.constant 6.400000e+01 : f32
    %331 = vector.broadcast %cst_115 : f32 to vector<2x1xf32>
    %332 = arith.divf %330, %331 : vector<2x1xf32>
    %333 = vector.broadcast %332 : vector<2x1xf32> to vector<2x64xf32>
    %334 = arith.subf %326, %333 : vector<2x64xf32>
    %335 = arith.mulf %334, %334 : vector<2x64xf32>
    %cst_116 = arith.constant dense<0.000000e+00> : vector<2xf32>
    %336 = vector.multi_reduction <add>, %335, %cst_116 [1] : vector<2x64xf32> to vector<2xf32>
    %337 = vector.shape_cast %336 : vector<2xf32> to vector<2x1xf32>
    %cst_117 = arith.constant 6.400000e+01 : f32
    %338 = vector.broadcast %cst_117 : f32 to vector<2x1xf32>
    %339 = arith.divf %337, %338 : vector<2x1xf32>
    %cst_118 = arith.constant 9.99999974E-6 : f32
    %340 = vector.broadcast %cst_118 : f32 to vector<2x1xf32>
    %341 = arith.addf %339, %340 : vector<2x1xf32>
    %342 = math.rsqrt %341 : vector<2x1xf32>
    %343 = vector.broadcast %342 : vector<2x1xf32> to vector<2x64xf32>
    %344 = arith.mulf %334, %343 : vector<2x64xf32>
    %345 = vector.broadcast %327 : vector<1x64xf32> to vector<2x64xf32>
    %346 = arith.mulf %344, %345 : vector<2x64xf32>
    %347 = vector.broadcast %328 : vector<1x64xf32> to vector<2x64xf32>
    %348 = arith.addf %346, %347 : vector<2x64xf32>
    %349 = arith.truncf %348 : vector<2x64xf32> to vector<2x64xbf16>
    %c0_119 = arith.constant 0 : index
    %c0_120 = arith.constant 0 : index
    %350 = vector.load %arg8[%c0_119, %c0_120] : memref<64x32xbf16, #tpu.memory_space<vmem>>, vector<64x32xbf16>
    %cst_121 = arith.constant dense<0.000000e+00> : vector<2x32xf32>
    %351 = tpu.matmul %349, %350, %cst_121 {dimension_numbers = #tpu.dot_dimension_numbers<[1], [0], [0], [1], [0, 0, 1, 1], [], []>} : vector<2x64xbf16>, vector<64x32xbf16>, vector<2x32xf32> -> vector<2x32xf32>
    %352 = arith.mulf %351, %351 : vector<2x32xf32>
    %cst_122 = arith.constant dense<0.000000e+00> : vector<2xf32>
    %353 = vector.multi_reduction <add>, %352, %cst_122 [1] : vector<2x32xf32> to vector<2xf32>
    %354 = vector.shape_cast %353 : vector<2xf32> to vector<2x1xf32>
    %cst_123 = arith.constant 9.99999996E-13 : f32
    %355 = vector.broadcast %cst_123 : f32 to vector<2x1xf32>
    %356 = arith.addf %354, %355 : vector<2x1xf32>
    %357 = math.rsqrt %356 : vector<2x1xf32>
    %358 = vector.broadcast %357 : vector<2x1xf32> to vector<2x32xf32>
    %359 = arith.mulf %351, %358 : vector<2x32xf32>
    %360 = arith.truncf %359 : vector<2x32xf32> to vector<2x32xbf16>
    %c0_124 = arith.constant 0 : index
    %c0_125 = arith.constant 0 : index
    %361 = vector.load %arg9[%c0_124, %c0_125] : memref<32x128xbf16, #tpu.memory_space<vmem>>, vector<32x128xbf16>
    %cst_126 = arith.constant dense<0.000000e+00> : vector<2x128xf32>
    %362 = tpu.matmul %360, %361, %cst_126 {dimension_numbers = #tpu.dot_dimension_numbers<[1], [0], [0], [1], [0, 0, 1, 1], [], []>} : vector<2x32xbf16>, vector<32x128xbf16>, vector<2x128xf32> -> vector<2x128xf32>
    %c0_127 = arith.constant 0 : index
    %c0_128 = arith.constant 0 : index
    %363 = vector.load %arg10[%c0_127, %c0_128] : memref<1x128xf32, #tpu.memory_space<vmem>>, vector<1x128xf32>
    %364 = vector.broadcast %363 : vector<1x128xf32> to vector<2x128xf32>
    %365 = arith.addf %362, %364 : vector<2x128xf32>
    %c0_129 = arith.constant 0 : index
    %c0_130 = arith.constant 0 : index
    %366 = vector.load %arg11[%c0_129, %c0_130] : memref<2x128xf32, #tpu.memory_space<vmem>>, vector<2x128xf32>
    tpu.vector_store %arg11[%c0_129, %c0_130], %365 {strides = array<i32>} : memref<2x128xf32, #tpu.memory_space<vmem>>, vector<2x128xf32>,
    return
  }
}

</mosaic_0001>

<llo_original>
// kernel: _clip_forward.1
$region0: #{_clip_forward.1}
  #allocation0 [shape = 'u32[]', space=smem, size = 0x4, offset = 0x4, fixed_abs, tag = 'smem constant byte address 0x4 - core index']
  #allocation1 [shape = 'u32[144,128]{1,0:T(1,128)}', space=vmem, size = 0x12000, scoped, tag = 'internal scratch']
  %s0 = inlined_call_operand.vmem [shape: bf16[16,768], index: 0, kind: input, shape index: {}]
  %s1 = inlined_call_operand.vmem [shape: bf16[768,64], index: 1, kind: input, shape index: {}]
  %s2 = inlined_call_operand.vmem [shape: bf16[2,64,192], index: 2, kind: input, shape index: {}]
  %s3 = inlined_call_operand.vmem [shape: bf16[2,64,64], index: 3, kind: input, shape index: {}]
  %s4 = inlined_call_operand.vmem [shape: bf16[2,64,256], index: 4, kind: input, shape index: {}]
  %s5 = inlined_call_operand.vmem [shape: bf16[2,256,64], index: 5, kind: input, shape index: {}]
  %s6 = inlined_call_operand.vmem [shape: f32[30,64], index: 6, kind: input, shape index: {}]
  %s7 = inlined_call_operand.vmem [shape: f32[2,256], index: 7, kind: input, shape index: {}]
  %s8 = inlined_call_operand.vmem [shape: bf16[64,32], index: 8, kind: input, shape index: {}]
  %s9 = inlined_call_operand.vmem [shape: bf16[32,128], index: 9, kind: input, shape index: {}]
  %s10 = inlined_call_operand.vmem [shape: f32[1,128], index: 10, kind: input, shape index: {}]
  %s11 = inlined_call_operand.hbm [shape: f32[2,128], index: 11, kind: output, shape index: {}]
  %s12 = sld [smem:[#allocation0]]
  $region54: #{_clip_forward.1} parent=0
    _
  %s14 = ssub.s32 1, %s12
  %s15 = scalar_select 0, %s14, %s12
  $region1: #{_clip_forward.1} parent=0
    #allocation2 [shape = 'u8[1024]{0}', space=vmem, size = 0x400, scoped, tag = 'output window, operand 0, single buffered']
    #allocation3 [shape = 's32[1]{0}', space=sflag, size = 0x4, scoped, tag = 'scoped memory for _clip_forward.1']
    %16 = vsyncpa [#allocation3], 0
    // Predicated region
    $region2: #{_clip_forward.1} parent=1 // pred_check
      _
    $region3: #{_clip_forward.1} parent=1 // pred_check_branch
      %18 = sbr.rel (0) target = $region5
    $region4: #{_clip_forward.1} parent=1 // pred_region
      _
    $region5: #{_clip_forward.1} parent=1 // pred_fallthru
      _
    // Predicated region
    $region6: #{_clip_forward.1} parent=1 // pred_check
      _
    $region7: #{_clip_forward.1} parent=1 // pred_check_branch
      %20 = sbr.rel (0) target = $region9
    $region8: #{_clip_forward.1} parent=1 // pred_region
      _
    $region9: #{_clip_forward.1} parent=1 // pred_fallthru
      _
    // Predicated region
    $region10: #{_clip_forward.1} parent=1 // pred_check
      _
    $region11: #{_clip_forward.1} parent=1 // pred_check_branch
      %22 = sbr.rel (0) target = $region13
    $region12: #{_clip_forward.1} parent=1 // pred_region
      _
    $region13: #{_clip_forward.1} parent=1 // pred_fallthru
      _
    // Predicated region
    $region14: #{_clip_forward.1} parent=1 // pred_check
      _
    $region15: #{_clip_forward.1} parent=1 // pred_check_branch
      %24 = sbr.rel (0) target = $region17
    $region16: #{_clip_forward.1} parent=1 // pred_region
      _
    $region17: #{_clip_forward.1} parent=1 // pred_fallthru
      _
    // Predicated region
    $region18: #{_clip_forward.1} parent=1 // pred_check
      _
    $region19: #{_clip_forward.1} parent=1 // pred_check_branch
      %26 = sbr.rel (0) target = $region21
    $region20: #{_clip_forward.1} parent=1 // pred_region
      _
    $region21: #{_clip_forward.1} parent=1 // pred_fallthru
      _
    // Predicated region
    $region22: #{_clip_forward.1} parent=1 // pred_check
      _
    $region23: #{_clip_forward.1} parent=1 // pred_check_branch
      %28 = sbr.rel (0) target = $region25
    $region24: #{_clip_forward.1} parent=1 // pred_region
      _
    $region25: #{_clip_forward.1} parent=1 // pred_fallthru
      _
    // Predicated region
    $region26: #{_clip_forward.1} parent=1 // pred_check
      _
    $region27: #{_clip_forward.1} parent=1 // pred_check_branch
      %30 = sbr.rel (0) target = $region29
    $region28: #{_clip_forward.1} parent=1 // pred_region
      _
    $region29: #{_clip_forward.1} parent=1 // pred_fallthru
      _
    // Predicated region
    $region30: #{_clip_forward.1} parent=1 // pred_check
      _
    $region31: #{_clip_forward.1} parent=1 // pred_check_branch
      %32 = sbr.rel (0) target = $region33
    $region32: #{_clip_forward.1} parent=1 // pred_region
      _
    $region33: #{_clip_forward.1} parent=1 // pred_fallthru
      _
    // Predicated region
    $region34: #{_clip_forward.1} parent=1 // pred_check
      _
    $region35: #{_clip_forward.1} parent=1 // pred_check_branch
      %34 = sbr.rel (0) target = $region37
    $region36: #{_clip_forward.1} parent=1 // pred_region
      _
    $region37: #{_clip_forward.1} parent=1 // pred_fallthru
      _
    // Predicated region
    $region38: #{_clip_forward.1} parent=1 // pred_check
      _
    $region39: #{_clip_forward.1} parent=1 // pred_check_branch
      %36 = sbr.rel (0) target = $region41
    $region40: #{_clip_forward.1} parent=1 // pred_region
      _
    $region41: #{_clip_forward.1} parent=1 // pred_fallthru
      _
    // Predicated region
    $region42: #{_clip_forward.1} parent=1 // pred_check
      _
    $region43: #{_clip_forward.1} parent=1 // pred_check_branch
      %38 = sbr.rel (0) target = $region45
    $region44: #{_clip_forward.1} parent=1 // pred_region
      _
    $region45: #{_clip_forward.1} parent=1 // pred_fallthru
      _
    %v40 = vld [vmem:[%s0] sm:$0xff]
    %v41 = vld [vmem:[%s0 + $0x8] sm:$0xff]
    %v42 = vld [vmem:[%s0 + $0x10] sm:$0xff]
    %v43 = vld [vmem:[%s0 + $0x18] sm:$0xff]
    %v44 = vld [vmem:[%s0 + $0x20] sm:$0xff]
    %v45 = vld [vmem:[%s0 + $0x28] sm:$0xff]
    %v46 = vld [vmem:[%s1] sm:$0xf]
    %v47 = vld [vmem:[%s1 + $0x4] sm:$0xf]
    %v48 = vld [vmem:[%s1 + $0x8] sm:$0xf]
    %v49 = vld [vmem:[%s1 + $0xc] sm:$0xf]
    %v50 = vld [vmem:[%s1 + $0x10] sm:$0xf]
    %v51 = vld [vmem:[%s1 + $0x14] sm:$0xf]
    %v52 = vld [vmem:[%s1 + $0x18] sm:$0xf]
    %v53 = vld [vmem:[%s1 + $0x1c] sm:$0xf]
    %v54 = vld [vmem:[%s1 + $0x20] sm:$0xf]
    %v55 = vld [vmem:[%s1 + $0x24] sm:$0xf]
    %v56 = vld [vmem:[%s1 + $0x28] sm:$0xf]
    %v57 = vld [vmem:[%s1 + $0x2c] sm:$0xf]
    %v58 = vld [vmem:[%s1 + $0x30] sm:$0xf]
    %v59 = vld [vmem:[%s1 + $0x34] sm:$0xf]
    %v60 = vld [vmem:[%s1 + $0x38] sm:$0xf]
    %v61 = vld [vmem:[%s1 + $0x3c] sm:$0xf]
    %v62 = vld [vmem:[%s1 + $0x40] sm:$0xf]
    %v63 = vld [vmem:[%s1 + $0x44] sm:$0xf]
    %v64 = vld [vmem:[%s1 + $0x48] sm:$0xf]
    %v65 = vld [vmem:[%s1 + $0x4c] sm:$0xf]
    %v66 = vld [vmem:[%s1 + $0x50] sm:$0xf]
    %v67 = vld [vmem:[%s1 + $0x54] sm:$0xf]
    %v68 = vld [vmem:[%s1 + $0x58] sm:$0xf]
    %v69 = vld [vmem:[%s1 + $0x5c] sm:$0xf]
    %v70 = vld [vmem:[%s1 + $0x60] sm:$0xf]
    %v71 = vld [vmem:[%s1 + $0x64] sm:$0xf]
    %v72 = vld [vmem:[%s1 + $0x68] sm:$0xf]
    %v73 = vld [vmem:[%s1 + $0x6c] sm:$0xf]
    %v74 = vld [vmem:[%s1 + $0x70] sm:$0xf]
    %v75 = vld [vmem:[%s1 + $0x74] sm:$0xf]
    %v76 = vld [vmem:[%s1 + $0x78] sm:$0xf]
    %v77 = vld [vmem:[%s1 + $0x7c] sm:$0xf]
    %v78 = vld [vmem:[%s1 + $0x80] sm:$0xf]
    %v79 = vld [vmem:[%s1 + $0x84] sm:$0xf]
    %v80 = vld [vmem:[%s1 + $0x88] sm:$0xf]
    %v81 = vld [vmem:[%s1 + $0x8c] sm:$0xf]
    %v82 = vld [vmem:[%s1 + $0x90] sm:$0xf]
    %v83 = vld [vmem:[%s1 + $0x94] sm:$0xf]
    %v84 = vld [vmem:[%s1 + $0x98] sm:$0xf]
    %v85 = vld [vmem:[%s1 + $0x9c] sm:$0xf]
    %v86 = vld [vmem:[%s1 + $0xa0] sm:$0xf]
    %v87 = vld [vmem:[%s1 + $0xa4] sm:$0xf]
    %v88 = vld [vmem:[%s1 + $0xa8] sm:$0xf]
    %v89 = vld [vmem:[%s1 + $0xac] sm:$0xf]
    %v90 = vld [vmem:[%s1 + $0xb0] sm:$0xf]
    %v91 = vld [vmem:[%s1 + $0xb4] sm:$0xf]
    %v92 = vld [vmem:[%s1 + $0xb8] sm:$0xf]
    %v93 = vld [vmem:[%s1 + $0xbc] sm:$0xf]
    %v94 = vld [vmem:[%s1 + $0xc0] sm:$0xf]
    %v95 = vld [vmem:[%s1 + $0xc4] sm:$0xf]
    %v96 = vld [vmem:[%s1 + $0xc8] sm:$0xf]
    %v97 = vld [vmem:[%s1 + $0xcc] sm:$0xf]
    %v98 = vld [vmem:[%s1 + $0xd0] sm:$0xf]
    %v99 = vld [vmem:[%s1 + $0xd4] sm:$0xf]
    %v100 = vld [vmem:[%s1 + $0xd8] sm:$0xf]
    %v101 = vld [vmem:[%s1 + $0xdc] sm:$0xf]
    %v102 = vld [vmem:[%s1 + $0xe0] sm:$0xf]
    %v103 = vld [vmem:[%s1 + $0xe4] sm:$0xf]
    %v104 = vld [vmem:[%s1 + $0xe8] sm:$0xf]
    %v105 = vld [vmem:[%s1 + $0xec] sm:$0xf]
    %v106 = vld [vmem:[%s1 + $0xf0] sm:$0xf]
    %v107 = vld [vmem:[%s1 + $0xf4] sm:$0xf]
    %v108 = vld [vmem:[%s1 + $0xf8] sm:$0xf]
    %v109 = vld [vmem:[%s1 + $0xfc] sm:$0xf]
    %v110 = vld [vmem:[%s1 + $0x100] sm:$0xf]
    %v111 = vld [vmem:[%s1 + $0x104] sm:$0xf]
    %v112 = vld [vmem:[%s1 + $0x108] sm:$0xf]
    %v113 = vld [vmem:[%s1 + $0x10c] sm:$0xf]
    %v114 = vld [vmem:[%s1 + $0x110] sm:$0xf]
    %v115 = vld [vmem:[%s1 + $0x114] sm:$0xf]
    %v116 = vld [vmem:[%s1 + $0x118] sm:$0xf]
    %v117 = vld [vmem:[%s1 + $0x11c] sm:$0xf]
    %v118 = vld [vmem:[%s1 + $0x120] sm:$0xf]
    %v119 = vld [vmem:[%s1 + $0x124] sm:$0xf]
    %v120 = vld [vmem:[%s1 + $0x128] sm:$0xf]
    %v121 = vld [vmem:[%s1 + $0x12c] sm:$0xf]
    %v122 = vld [vmem:[%s1 + $0x130] sm:$0xf]
    %v123 = vld [vmem:[%s1 + $0x134] sm:$0xf]
    %v124 = vld [vmem:[%s1 + $0x138] sm:$0xf]
    %v125 = vld [vmem:[%s1 + $0x13c] sm:$0xf]
    %v126 = vld [vmem:[%s1 + $0x140] sm:$0xf]
    %v127 = vld [vmem:[%s1 + $0x144] sm:$0xf]
    %v128 = vld [vmem:[%s1 + $0x148] sm:$0xf]
    %v129 = vld [vmem:[%s1 + $0x14c] sm:$0xf]
    %v130 = vld [vmem:[%s1 + $0x150] sm:$0xf]
    %v131 = vld [vmem:[%s1 + $0x154] sm:$0xf]
    %v132 = vld [vmem:[%s1 + $0x158] sm:$0xf]
    %v133 = vld [vmem:[%s1 + $0x15c] sm:$0xf]
    %v134 = vld [vmem:[%s1 + $0x160] sm:$0xf]
    %v135 = vld [vmem:[%s1 + $0x164] sm:$0xf]
    %v136 = vld [vmem:[%s1 + $0x168] sm:$0xf]
    %v137 = vld [vmem:[%s1 + $0x16c] sm:$0xf]
    %v138 = vld [vmem:[%s1 + $0x170] sm:$0xf]
    %v139 = vld [vmem:[%s1 + $0x174] sm:$0xf]
    %v140 = vld [vmem:[%s1 + $0x178] sm:$0xf]
    %v141 = vld [vmem:[%s1 + $0x17c] sm:$0xf]
    %v142 = vld [vmem:[%s6] sm:$0xff]
    %v149 = vunpack.c.l.b16 %v40
    %v150 = vunpack.c.h.b16 %v40
    %v151 = vunpack.c.l.b16 %v41
    %v152 = vunpack.c.h.b16 %v41
    %v153 = vunpack.c.l.b16 %v42
    %v154 = vunpack.c.h.b16 %v42
    %v155 = vunpack.c.l.b16 %v43
    %v156 = vunpack.c.h.b16 %v43
    %v157 = vunpack.c.l.b16 %v44
    %v158 = vunpack.c.h.b16 %v44
    %v159 = vunpack.c.l.b16 %v45
    %v160 = vunpack.c.h.b16 %v45
    %v161 = vpack.c.b16 %v155, %v149
    %v162 = vpack.c.b16 %v156, %v150
    %v163 = vpack.c.b16 %v157, %v151
    %v164 = vpack.c.b16 %v158, %v152
    %v165 = vpack.c.b16 %v159, %v153
    %v166 = vpack.c.b16 %v160, %v154
    %v269 = vunpack.c.l.b16 %v46
    %v270 = vunpack.c.l.b16 %v47
    %v271 = vunpack.c.l.b16 %v48
    %v272 = vunpack.c.l.b16 %v49
    %v273 = vunpack.c.l.b16 %v50
    %v274 = vunpack.c.l.b16 %v51
    %v275 = vunpack.c.l.b16 %v52
    %v276 = vunpack.c.l.b16 %v53
    %v277 = vunpack.c.l.b16 %v54
    %v278 = vunpack.c.l.b16 %v55
    %v279 = vunpack.c.l.b16 %v56
    %v280 = vunpack.c.l.b16 %v57
    %v281 = vunpack.c.l.b16 %v58
    %v282 = vunpack.c.l.b16 %v59
    %v283 = vunpack.c.l.b16 %v60
    %v284 = vunpack.c.l.b16 %v61
    %v285 = vunpack.c.l.b16 %v62
    %v286 = vunpack.c.l.b16 %v63
    %v287 = vunpack.c.l.b16 %v64
    %v288 = vunpack.c.l.b16 %v65
    %v289 = vunpack.c.l.b16 %v66
    %v290 = vunpack.c.l.b16 %v67
    %v291 = vunpack.c.l.b16 %v68
    %v292 = vunpack.c.l.b16 %v69
    %v293 = vunpack.c.l.b16 %v70
    %v294 = vunpack.c.l.b16 %v71
    %v295 = vunpack.c.l.b16 %v72
    %v296 = vunpack.c.l.b16 %v73
    %v297 = vunpack.c.l.b16 %v74
    %v298 = vunpack.c.l.b16 %v75
    %v299 = vunpack.c.l.b16 %v76
    %v300 = vunpack.c.l.b16 %v77
    %v301 = vunpack.c.l.b16 %v78
    %v302 = vunpack.c.l.b16 %v79
    %v303 = vunpack.c.l.b16 %v80
    %v304 = vunpack.c.l.b16 %v81
    %v305 = vunpack.c.l.b16 %v82
    %v306 = vunpack.c.l.b16 %v83
    %v307 = vunpack.c.l.b16 %v84
    %v308 = vunpack.c.l.b16 %v85
    %v309 = vunpack.c.l.b16 %v86
    %v310 = vunpack.c.l.b16 %v87
    %v311 = vunpack.c.l.b16 %v88
    %v312 = vunpack.c.l.b16 %v89
    %v313 = vunpack.c.l.b16 %v90
    %v314 = vunpack.c.l.b16 %v91
    %v315 = vunpack.c.l.b16 %v92
    %v316 = vunpack.c.l.b16 %v93
    %v317 = vunpack.c.l.b16 %v94
    %v318 = vunpack.c.l.b16 %v95
    %v319 = vunpack.c.l.b16 %v96
    %v320 = vunpack.c.l.b16 %v97
    %v321 = vunpack.c.l.b16 %v98
    %v322 = vunpack.c.l.b16 %v99
    %v323 = vunpack.c.l.b16 %v100
    %v324 = vunpack.c.l.b16 %v101
    %v325 = vunpack.c.l.b16 %v102
    %v326 = vunpack.c.l.b16 %v103
    %v327 = vunpack.c.l.b16 %v104
    %v328 = vunpack.c.l.b16 %v105
    %v329 = vunpack.c.l.b16 %v106
    %v330 = vunpack.c.l.b16 %v107
    %v331 = vunpack.c.l.b16 %v108
    %v332 = vunpack.c.l.b16 %v109
    %v333 = vunpack.c.l.b16 %v110
    %v334 = vunpack.c.l.b16 %v111
    %v335 = vunpack.c.l.b16 %v112
    %v336 = vunpack.c.l.b16 %v113
    %v337 = vunpack.c.l.b16 %v114
    %v338 = vunpack.c.l.b16 %v115
    %v339 = vunpack.c.l.b16 %v116
    %v340 = vunpack.c.l.b16 %v117
    %v341 = vunpack.c.l.b16 %v118
    %v342 = vunpack.c.l.b16 %v119
    %v343 = vunpack.c.l.b16 %v120
    %v344 = vunpack.c.l.b16 %v121
    %v345 = vunpack.c.l.b16 %v122
    %v346 = vunpack.c.l.b16 %v123
    %v347 = vunpack.c.l.b16 %v124
    %v348 = vunpack.c.l.b16 %v125
    %v349 = vunpack.c.l.b16 %v126
    %v350 = vunpack.c.l.b16 %v127
    %v351 = vunpack.c.l.b16 %v128
    %v352 = vunpack.c.l.b16 %v129
    %v353 = vunpack.c.l.b16 %v130
    %v354 = vunpack.c.l.b16 %v131
    %v355 = vunpack.c.l.b16 %v132
    %v356 = vunpack.c.l.b16 %v133
    %v357 = vunpack.c.l.b16 %v134
    %v358 = vunpack.c.l.b16 %v135
    %v359 = vunpack.c.l.b16 %v136
    %v360 = vunpack.c.l.b16 %v137
    %v361 = vunpack.c.l.b16 %v138
    %v362 = vunpack.c.l.b16 %v139
    %v363 = vunpack.c.l.b16 %v140
    %v364 = vunpack.c.l.b16 %v141
    %v365 = vpack.c.b16 %v270, %v269
    %v366 = vpack.c.b16 %v272, %v271
    %v367 = vpack.c.b16 %v274, %v273
    %v368 = vpack.c.b16 %v276, %v275
    %v369 = vpack.c.b16 %v278, %v277
    %v370 = vpack.c.b16 %v280, %v279
    %v371 = vpack.c.b16 %v282, %v281
    %v372 = vpack.c.b16 %v284, %v283
    %v373 = vpack.c.b16 %v286, %v285
    %v374 = vpack.c.b16 %v288, %v287
    %v375 = vpack.c.b16 %v290, %v289
    %v376 = vpack.c.b16 %v292, %v291
    %v377 = vpack.c.b16 %v294, %v293
    %v378 = vpack.c.b16 %v296, %v295
    %v379 = vpack.c.b16 %v298, %v297
    %v380 = vpack.c.b16 %v300, %v299
    %v381 = vpack.c.b16 %v302, %v301
    %v382 = vpack.c.b16 %v304, %v303
    %v383 = vpack.c.b16 %v306, %v305
    %v384 = vpack.c.b16 %v308, %v307
    %v385 = vpack.c.b16 %v310, %v309
    %v386 = vpack.c.b16 %v312, %v311
    %v387 = vpack.c.b16 %v314, %v313
    %v388 = vpack.c.b16 %v316, %v315
    %v389 = vpack.c.b16 %v318, %v317
    %v390 = vpack.c.b16 %v320, %v319
    %v391 = vpack.c.b16 %v322, %v321
    %v392 = vpack.c.b16 %v324, %v323
    %v393 = vpack.c.b16 %v326, %v325
    %v394 = vpack.c.b16 %v328, %v327
    %v395 = vpack.c.b16 %v330, %v329
    %v396 = vpack.c.b16 %v332, %v331
    %v397 = vpack.c.b16 %v334, %v333
    %v398 = vpack.c.b16 %v336, %v335
    %v399 = vpack.c.b16 %v338, %v337
    %v400 = vpack.c.b16 %v340, %v339
    %v401 = vpack.c.b16 %v342, %v341
    %v402 = vpack.c.b16 %v344, %v343
    %v403 = vpack.c.b16 %v346, %v345
    %v404 = vpack.c.b16 %v348, %v347
    %v405 = vpack.c.b16 %v350, %v349
    %v406 = vpack.c.b16 %v352, %v351
    %v407 = vpack.c.b16 %v354, %v353
    %v408 = vpack.c.b16 %v356, %v355
    %v409 = vpack.c.b16 %v358, %v357
    %v410 = vpack.c.b16 %v360, %v359
    %v411 = vpack.c.b16 %v362, %v361
    %v412 = vpack.c.b16 %v364, %v363
    %461 = vmatprep.subr.bf16.mxu0 0
    %462 = vmatpush1.bf16.msra.mxu0 %v365
    %463 = vmatprep.subr.bf16.mxu0 0
    %464 = vmatpush1.bf16.msra.mxu0 %v366
    %465 = vmatprep.subr.bf16.mxu0 0
    %466 = vmatpush1.bf16.msra.mxu0 %v367
    %467 = vmatprep.subr.bf16.mxu0 0
    %468 = vmatpush1.bf16.msra.mxu0 %v368
    %469 = vmatprep.subr.bf16.mxu0 0
    %470 = vmatpush1.bf16.msra.mxu0 %v369
    %471 = vmatprep.subr.bf16.mxu0 0
    %472 = vmatpush1.bf16.msra.mxu0 %v370
    %473 = vmatprep.subr.bf16.mxu0 0
    %474 = vmatpush1.bf16.msra.mxu0 %v371
    %475 = vmatprep.subr.bf16.mxu0 0
    %476 = vmatpush1.bf16.msra.mxu0 %v372
    %477 = vmatprep.subr.bf16.mxu0 0
    %478 = vmatpush1.bf16.msra.mxu0 %v373
    %479 = vmatprep.subr.bf16.mxu0 0
    %480 = vmatpush1.bf16.msra.mxu0 %v374
    %481 = vmatprep.subr.bf16.mxu0 0
    %482 = vmatpush1.bf16.msra.mxu0 %v375
    %483 = vmatprep.subr.bf16.mxu0 0
    %484 = vmatpush1.bf16.msra.mxu0 %v376
    %485 = vmatprep.subr.bf16.mxu0 0
    %486 = vmatpush1.bf16.msra.mxu0 %v377
    %487 = vmatprep.subr.bf16.mxu0 0
    %488 = vmatpush1.bf16.msra.mxu0 %v378
    %489 = vmatprep.subr.bf16.mxu0 0
    %490 = vmatpush1.bf16.msra.mxu0 %v379
    %491 = vmatprep.subr.bf16.mxu0 0
    %492 = vmatpush1.bf16.msra.mxu0 %v380
    %493 = vmatprep.mubr.bf16.mxu0 %v162
    %494 = vmatmul.mubr.bf16.gmra.mrb[0].mxu0 %v161
    %v495 = vpop.f32.mrb[0].mxu0
    %v496 = vadd.f32 %v142, %v495
    %v497 = vpop.f32.mrb[0].mxu0
    %v498 = vpop.f32.mrb[0].mxu0
    %v499 = vadd.f32 %v142, %v498
    %v500 = vpop.f32.mrb[0].mxu0
    %501 = vdwg.mxu0
    %502 = vmatprep.subr.bf16.mxu0 0
    %503 = vmatpush1.bf16.msra.mxu0 %v381
    %504 = vmatprep.subr.bf16.mxu0 0
    %505 = vmatpush1.bf16.msra.mxu0 %v382
    %506 = vmatprep.subr.bf16.mxu0 0
    %507 = vmatpush1.bf16.msra.mxu0 %v383
    %508 = vmatprep.subr.bf16.mxu0 0
    %509 = vmatpush1.bf16.msra.mxu0 %v384
    %510 = vmatprep.subr.bf16.mxu0 0
    %511 = vmatpush1.bf16.msra.mxu0 %v385
    %512 = vmatprep.subr.bf16.mxu0 0
    %513 = vmatpush1.bf16.msra.mxu0 %v386
    %514 = vmatprep.subr.bf16.mxu0 0
    %515 = vmatpush1.bf16.msra.mxu0 %v387
    %516 = vmatprep.subr.bf16.mxu0 0
    %517 = vmatpush1.bf16.msra.mxu0 %v388
    %518 = vmatprep.subr.bf16.mxu0 0
    %519 = vmatpush1.bf16.msra.mxu0 %v389
    %520 = vmatprep.subr.bf16.mxu0 0
    %521 = vmatpush1.bf16.msra.mxu0 %v390
    %522 = vmatprep.subr.bf16.mxu0 0
    %523 = vmatpush1.bf16.msra.mxu0 %v391
    %524 = vmatprep.subr.bf16.mxu0 0
    %525 = vmatpush1.bf16.msra.mxu0 %v392
    %526 = vmatprep.subr.bf16.mxu0 0
    %527 = vmatpush1.bf16.msra.mxu0 %v393
    %528 = vmatprep.subr.bf16.mxu0 0
    %529 = vmatpush1.bf16.msra.mxu0 %v394
    %530 = vmatprep.subr.bf16.mxu0 0
    %531 = vmatpush1.bf16.msra.mxu0 %v395
    %532 = vmatprep.subr.bf16.mxu0 0
    %533 = vmatpush1.bf16.msra.mxu0 %v396
    %534 = vmatprep.mubr.bf16.mxu0 %v164
    %535 = vmatmul.mubr.bf16.gmra.mrb[0].mxu0 %v163
    %v536 = vpop.f32.mrb[0].mxu0
    %v537 = vadd.f32 %v496, %v536
    %v538 = vpop.f32.mrb[0].mxu0
    %v539 = vpop.f32.mrb[0].mxu0
    %v540 = vadd.f32 %v499, %v539
    %v541 = vpop.f32.mrb[0].mxu0
    %542 = vdwg.mxu0
    %543 = vmatprep.subr.bf16.mxu0 0
    %544 = vmatpush1.bf16.msra.mxu0 %v397
    %545 = vmatprep.subr.bf16.mxu0 0
    %546 = vmatpush1.bf16.msra.mxu0 %v398
    %547 = vmatprep.subr.bf16.mxu0 0
    %548 = vmatpush1.bf16.msra.mxu0 %v399
    %549 = vmatprep.subr.bf16.mxu0 0
    %550 = vmatpush1.bf16.msra.mxu0 %v400
    %551 = vmatprep.subr.bf16.mxu0 0
    %552 = vmatpush1.bf16.msra.mxu0 %v401
    %553 = vmatprep.subr.bf16.mxu0 0
    %554 = vmatpush1.bf16.msra.mxu0 %v402
    %555 = vmatprep.subr.bf16.mxu0 0
    %556 = vmatpush1.bf16.msra.mxu0 %v403
    %557 = vmatprep.subr.bf16.mxu0 0
    %558 = vmatpush1.bf16.msra.mxu0 %v404
    %559 = vmatprep.subr.bf16.mxu0 0
    %560 = vmatpush1.bf16.msra.mxu0 %v405
    %561 = vmatprep.subr.bf16.mxu0 0
    %562 = vmatpush1.bf16.msra.mxu0 %v406
    %563 = vmatprep.subr.bf16.mxu0 0
    %564 = vmatpush1.bf16.msra.mxu0 %v407
    %565 = vmatprep.subr.bf16.mxu0 0
    %566 = vmatpush1.bf16.msra.mxu0 %v408
    %567 = vmatprep.subr.bf16.mxu0 0
    %568 = vmatpush1.bf16.msra.mxu0 %v409
    %569 = vmatprep.subr.bf16.mxu0 0
    %570 = vmatpush1.bf16.msra.mxu0 %v410
    %571 = vmatprep.subr.bf16.mxu0 0
    %572 = vmatpush1.bf16.msra.mxu0 %v411
    %573 = vmatprep.subr.bf16.mxu0 0
    %574 = vmatpush1.bf16.msra.mxu0 %v412
    %575 = vmatprep.mubr.bf16.mxu0 %v166
    %576 = vmatmul.mubr.bf16.gmra.mrb[0].mxu0 %v165
    %v577 = vpop.f32.mrb[0].mxu0
    %v578 = vadd.f32 %v537, %v577
    %v579 = vpop.f32.mrb[0].mxu0
    %v580 = vpop.f32.mrb[0].mxu0
    %v581 = vadd.f32 %v540, %v580
    %v582 = vpop.f32.mrb[0].mxu0
    %583 = vdwg.mxu0
    %v584 = vld [vmem:[%s6 + $0x8] sm:$0x1]
    %v585 = vld [vmem:[%s6 + $0x9] sm:$0x1]
    %vm586 = vcmask 523264
    %v587 = vsel %vm586, %v578, 0.0
    %588 = vadd.xlane.f32.xlu0 %v587
    %v589 = vpop.xlane.xlu0 %588
    %v590 = vsel %vm586, %v581, 0.0
    %591 = vadd.xlane.f32.xlu0 %v590
    %v592 = vpop.xlane.xlu0 %591
    %v593 = vrcp.pop 64.0
    %v594 = vmul.f32 %v589, %v593
    %v595 = vmul.f32 %v592, %v593
    %v596 = vsub.f32 %v578, %v594
    %v597 = vsub.f32 %v581, %v595
    %v598 = vmul.f32 %v596, %v596
    %v599 = vmul.f32 %v597, %v597
    %v600 = vsel %vm586, %v598, 0.0
    %601 = vadd.xlane.f32.xlu0 %v600
    %v602 = vpop.xlane.xlu0 %601
    %v603 = vsel %vm586, %v599, 0.0
    %604 = vadd.xlane.f32.xlu0 %v603
    %v605 = vpop.xlane.xlu0 %604
    %v606 = vmul.f32 %v602, %v593
    %v607 = vmul.f32 %v605, %v593
    %v608 = vadd.f32 %v606, 1e-05
    %v609 = vadd.f32 %v607, 1e-05
    %v610 = vrsqrt.pop %v608
    %v611 = vrsqrt.pop %v609
    %v612 = vmul.f32 %v596, %v610
    %v613 = vmul.f32 %v597, %v611
    %v614 = vlaneseq
    %v615 = vshrl.u32 %v614, 7
    %v616 = vsub.s32 0, %v615
    %v617 = vrot.slane %v584, %v616
    %v618 = vmul.f32 %v612, %v617
    %v619 = vmul.f32 %v613, %v617
    %v620 = vlaneseq
    %v621 = vshrl.u32 %v620, 7
    %v622 = vsub.s32 0, %v621
    %v623 = vrot.slane %v585, %v622
    %v624 = vadd.f32 %v618, %v623
    %v625 = vadd.f32 %v619, %v623
    %v626 = vlaneseq
    %v627 = vshrl.u32 %v626, 7
    %v628 = vadd.s32 %v627, 8
    %v629 = vlaneseq
    %v630 = vand.u32 %v629, 127
    %v631 = vshra.s32 %v627, 3
    %v632 = vshra.s32 %v628, 3
    %v633 = vshra.s32 %v630, 5
    %vm634 = vcmp.eq.s32.totalorder %v631, %v633
    %vm635 = vcmp.eq.s32.totalorder %v632, %v633
    %v636 = vand.u32 %v630, 7
    %vm637 = vcmp.lt.s32.totalorder %v636, 5
    %vm638 = vmand %vm634, %vm637
    %vm639 = vmand %vm635, %vm637
    %v640 = vsel %vm638, 0.0, -1e+30
    %v641 = vsel %vm639, 0.0, -1e+30
    %v642 = vadd.s32 %v627, 16
    %v643 = vadd.s32 %v627, 24
    %v644 = vadd.s32 %v627, 32
    %v645 = vadd.s32 %v627, 40
    %v646 = vadd.s32 %v627, 48
    %v647 = vadd.s32 %v627, 56
    %v648 = vshra.s32 %v642, 3
    %v649 = vshra.s32 %v643, 3
    %v650 = vshra.s32 %v644, 3
    %v651 = vshra.s32 %v645, 3
    %v652 = vshra.s32 %v646, 3
    %v653 = vshra.s32 %v647, 3
    %v654 = vand.u32 %v631, 3
    %v655 = vand.u32 %v632, 3
    %v656 = vand.u32 %v648, 3
    %v657 = vand.u32 %v649, 3
    %v658 = vand.u32 %v650, 3
    %v659 = vand.u32 %v651, 3
    %v660 = vand.u32 %v652, 3
    %v661 = vand.u32 %v653, 3
    %v662 = vshra.s32 %v630, 4
    %vm663 = vcmp.eq.s32.totalorder %v654, %v662
    %vm664 = vcmp.eq.s32.totalorder %v655, %v662
    %vm665 = vcmp.eq.s32.totalorder %v656, %v662
    %vm666 = vcmp.eq.s32.totalorder %v657, %v662
    %vm667 = vcmp.eq.s32.totalorder %v658, %v662
    %vm668 = vcmp.eq.s32.totalorder %v659, %v662
    %vm669 = vcmp.eq.s32.totalorder %v660, %v662
    %vm670 = vcmp.eq.s32.totalorder %v661, %v662
    %v671 = vsel %vm663, 1.0, 0.0
    %v672 = vsel %vm664, 1.0, 0.0
    %v673 = vsel %vm665, 1.0, 0.0
    %v674 = vsel %vm666, 1.0, 0.0
    %v675 = vsel %vm667, 1.0, 0.0
    %v676 = vsel %vm668, 1.0, 0.0
    %v677 = vsel %vm669, 1.0, 0.0
    %v678 = vsel %vm670, 1.0, 0.0
    %v679 = vshra.s32 %v630, 3
    %vm680 = vcmp.eq.s32.totalorder %v631, %v679
    %vm681 = vcmp.eq.s32.totalorder %v632, %v679
    %vm682 = vcmp.eq.s32.totalorder %v648, %v679
    %vm683 = vcmp.eq.s32.totalorder %v649, %v679
    %vm684 = vcmp.eq.s32.totalorder %v650, %v679
    %vm685 = vcmp.eq.s32.totalorder %v651, %v679
    %vm686 = vcmp.eq.s32.totalorder %v652, %v679
    %vm687 = vcmp.eq.s32.totalorder %v653, %v679
    %v688 = vsel %vm680, 1.0, 0.0
    %v689 = vsel %vm681, 1.0, 0.0
    %v690 = vsel %vm682, 1.0, 0.0
    %v691 = vsel %vm683, 1.0, 0.0
    %v692 = vsel %vm684, 1.0, 0.0
    %v693 = vsel %vm685, 1.0, 0.0
    %v694 = vsel %vm686, 1.0, 0.0
    %v695 = vsel %vm687, 1.0, 0.0
    %v696 = vpack.c.bf16 %v689, %v688
    %v697 = vpack.c.bf16 %v691, %v690
    %v698 = vpack.c.bf16 %v693, %v692
    %v699 = vpack.c.bf16 %v695, %v694
    %v700 = vld [vmem:[%s6 + $0xc] sm:$0x1]
    %v701 = vld [vmem:[%s6 + $0xd] sm:$0x1]
    %v702 = vsel %vm586, %v624, 0.0
    %703 = vadd.xlane.f32.xlu0 %v702
    %v704 = vpop.xlane.xlu0 %703
    %v705 = vsel %vm586, %v625, 0.0
    %706 = vadd.xlane.f32.xlu0 %v705
    %v707 = vpop.xlane.xlu0 %706
    %v708 = vmul.f32 %v704, %v593
    %v709 = vmul.f32 %v707, %v593
    %v710 = vsub.f32 %v624, %v708
    %v711 = vsub.f32 %v625, %v709
    %v712 = vmul.f32 %v710, %v710
    %v713 = vmul.f32 %v711, %v711
    %v714 = vsel %vm586, %v712, 0.0
    %715 = vadd.xlane.f32.xlu0 %v714
    %v716 = vpop.xlane.xlu0 %715
    %v717 = vsel %vm586, %v713, 0.0
    %718 = vadd.xlane.f32.xlu0 %v717
    %v719 = vpop.xlane.xlu0 %718
    %v720 = vmul.f32 %v716, %v593
    %v721 = vmul.f32 %v719, %v593
    %v722 = vadd.f32 %v720, 1e-05
    %v723 = vadd.f32 %v721, 1e-05
    %v724 = vrsqrt.pop %v722
    %v725 = vrsqrt.pop %v723
    %v726 = vmul.f32 %v710, %v724
    %v727 = vmul.f32 %v711, %v725
    %v728 = vlaneseq
    %v729 = vshrl.u32 %v728, 7
    %v730 = vsub.s32 0, %v729
    %v731 = vrot.slane %v700, %v730
    %v732 = vmul.f32 %v726, %v731
    %v733 = vmul.f32 %v727, %v731
    %v734 = vlaneseq
    %v735 = vshrl.u32 %v734, 7
    %v736 = vsub.s32 0, %v735
    %v737 = vrot.slane %v701, %v736
    %v738 = vadd.f32 %v732, %v737
    %v739 = vadd.f32 %v733, %v737
    %v740 = vpack.c.bf16 %v739, %v738
    %v741 = vld [vmem:[%s2] sm:$0xff]
    %v742 = vld [vmem:[%s2 + $0x8] sm:$0xff]
    %v743 = vld [vmem:[%s2 + $0x10] sm:$0xff]
    %v744 = vld [vmem:[%s2 + $0x18] sm:$0xff]
    %v745 = vld [vmem:[%s2 + $0x20] sm:$0xff]
    %v746 = vld [vmem:[%s2 + $0x28] sm:$0xff]
    %v747 = vld [vmem:[%s2 + $0x30] sm:$0xff]
    %v748 = vld [vmem:[%s2 + $0x38] sm:$0xff]
    %v757 = vunpack.c.l.b16 %v741
    %v758 = vunpack.c.h.b16 %v741
    %v759 = vunpack.c.l.b16 %v742
    %v760 = vunpack.c.h.b16 %v742
    %v761 = vunpack.c.l.b16 %v743
    %v762 = vunpack.c.h.b16 %v743
    %v763 = vunpack.c.l.b16 %v744
    %v764 = vunpack.c.h.b16 %v744
    %v765 = vunpack.c.l.b16 %v745
    %v766 = vunpack.c.h.b16 %v745
    %v767 = vunpack.c.l.b16 %v746
    %v768 = vunpack.c.h.b16 %v746
    %v769 = vunpack.c.l.b16 %v747
    %v770 = vunpack.c.h.b16 %v747
    %v771 = vunpack.c.l.b16 %v748
    %v772 = vunpack.c.h.b16 %v748
    %v773 = vpack.c.b16 %v759, %v757
    %v774 = vpack.c.b16 %v760, %v758
    %v775 = vpack.c.b16 %v763, %v761
    %v776 = vpack.c.b16 %v764, %v762
    %v777 = vpack.c.b16 %v767, %v765
    %v778 = vpack.c.b16 %v768, %v766
    %v779 = vpack.c.b16 %v771, %v769
    %v780 = vpack.c.b16 %v772, %v770
    %v790 = vsel %vm586, %v740, 0
    %792 = vmatprep.subr.bf16.mxu0 %v774
    %793 = vmatpush1.bf16.msra.mxu0 %v773
    %794 = vmatprep.subr.bf16.mxu0 %v776
    %795 = vmatpush1.bf16.msra.mxu0 %v775
    %796 = vmatprep.subr.bf16.mxu0 %v778
    %797 = vmatpush1.bf16.msra.mxu0 %v777
    %798 = vmatprep.subr.bf16.mxu0 %v780
    %799 = vmatpush1.bf16.msra.mxu0 %v779
    %800 = vmatprep.subr.bf16.mxu0 0
    %801 = vmatpush1.bf16.msra.mxu0 0
    %802 = vmatprep.subr.bf16.mxu0 0
    %803 = vmatpush1.bf16.msra.mxu0 0
    %804 = vmatprep.subr.bf16.mxu0 0
    %805 = vmatpush1.bf16.msra.mxu0 0
    %806 = vmatprep.subr.bf16.mxu0 0
    %807 = vmatpush1.bf16.msra.mxu0 0
    %808 = vmatprep.subr.bf16.mxu0 0
    %809 = vmatpush1.bf16.msra.mxu0 0
    %810 = vmatprep.subr.bf16.mxu0 0
    %811 = vmatpush1.bf16.msra.mxu0 0
    %812 = vmatprep.subr.bf16.mxu0 0
    %813 = vmatpush1.bf16.msra.mxu0 0
    %814 = vmatprep.subr.bf16.mxu0 0
    %815 = vmatpush1.bf16.msra.mxu0 0
    %816 = vmatprep.subr.bf16.mxu0 0
    %817 = vmatpush1.bf16.msra.mxu0 0
    %818 = vmatprep.subr.bf16.mxu0 0
    %819 = vmatpush1.bf16.msra.mxu0 0
    %820 = vmatprep.subr.bf16.mxu0 0
    %821 = vmatpush1.bf16.msra.mxu0 0
    %822 = vmatprep.subr.bf16.mxu0 0
    %823 = vmatpush1.bf16.msra.mxu0 0
    %824 = vmatprep.mubr.bf16.mxu0 0
    %825 = vmatmul.mubr.bf16.gmra.mrb[0].mxu0 %v790
    %v826 = vpop.f32.mrb[0].mxu0
    %v827 = vadd.f32 0.0, %v826
    %v828 = vpop.f32.mrb[0].mxu0
    %v829 = vadd.f32 0.0, %v828
    %v830 = vpop.f32.mrb[0].mxu0
    %v831 = vadd.f32 0.0, %v830
    %v832 = vpop.f32.mrb[0].mxu0
    %v833 = vadd.f32 0.0, %v832
    %834 = vdwg.mxu0
    %v835 = vld [vmem:[%s6 + $0xe] sm:$0x1]
    %v836 = vlaneseq
    %v837 = vshrl.u32 %v836, 7
    %v838 = vsub.s32 0, %v837
    %v839 = vrot.slane %v835, %v838
    %v840 = vadd.f32 %v827, %v839
    %v841 = vadd.f32 %v831, %v839
    %v842 = vld [vmem:[%s6 + $0xf] sm:$0x1]
    %v843 = vlaneseq
    %v844 = vshrl.u32 %v843, 7
    %v845 = vsub.s32 0, %v844
    %v846 = vrot.slane %v842, %v845
    %848 = vrot.lane.b32.xlu0 %v846, 64
    %v849 = vpop.permute.xlu0 %848
    %v851 = vadd.f32 %v827, %v849
    %v852 = vadd.f32 %v831, %v849
    %v853 = vld [vmem:[%s6 + $0x10] sm:$0x1]
    %v854 = vlaneseq
    %v855 = vshrl.u32 %v854, 7
    %v856 = vsub.s32 0, %v855
    %v857 = vrot.slane %v853, %v856
    %v858 = vadd.f32 %v829, %v857
    %v859 = vadd.f32 %v833, %v857
    %868 = vrot.lane.b32.xlu0 %v671, 64
    %v869 = vpop.permute.xlu0 %868
    %870 = vrot.lane.b32.xlu0 %v672, 64
    %v871 = vpop.permute.xlu0 %870
    %872 = vrot.lane.b32.xlu0 %v673, 64
    %v873 = vpop.permute.xlu0 %872
    %874 = vrot.lane.b32.xlu0 %v674, 64
    %v875 = vpop.permute.xlu0 %874
    %876 = vrot.lane.b32.xlu0 %v675, 64
    %v877 = vpop.permute.xlu0 %876
    %878 = vrot.lane.b32.xlu0 %v676, 64
    %v879 = vpop.permute.xlu0 %878
    %880 = vrot.lane.b32.xlu0 %v677, 64
    %v881 = vpop.permute.xlu0 %880
    %882 = vrot.lane.b32.xlu0 %v678, 64
    %v883 = vpop.permute.xlu0 %882
    %v892 = vmul.f32 %v851, %v869
    %v893 = vmul.f32 %v851, %v871
    %v894 = vmul.f32 %v851, %v873
    %v895 = vmul.f32 %v851, %v875
    %v896 = vmul.f32 %v852, %v877
    %v897 = vmul.f32 %v852, %v879
    %v898 = vmul.f32 %v852, %v881
    %v899 = vmul.f32 %v852, %v883
    %v900 = vpack.c.bf16 %v893, %v892
    %v901 = vpack.c.bf16 %v895, %v894
    %v902 = vpack.c.bf16 %v897, %v896
    %v903 = vpack.c.bf16 %v899, %v898
    %v904 = vmul.f32 %v858, %v671
    %v905 = vmul.f32 %v858, %v672
    %v906 = vmul.f32 %v858, %v673
    %v907 = vmul.f32 %v858, %v674
    %v908 = vmul.f32 %v859, %v675
    %v909 = vmul.f32 %v859, %v676
    %v910 = vmul.f32 %v859, %v677
    %v911 = vmul.f32 %v859, %v678
    %v912 = vpack.c.bf16 %v905, %v904
    %v913 = vpack.c.bf16 %v907, %v906
    %v914 = vpack.c.bf16 %v909, %v908
    %v915 = vpack.c.bf16 %v911, %v910
    %v916 = vpack.c.bf16 %v841, %v840
    %921 = vrot.lane.b32.xlu0 %v900, 64
    %v922 = vpop.permute.xlu0 %921
    %923 = vrot.lane.b32.xlu0 %v901, 64
    %v924 = vpop.permute.xlu0 %923
    %925 = vrot.lane.b32.xlu0 %v902, 64
    %v926 = vpop.permute.xlu0 %925
    %927 = vrot.lane.b32.xlu0 %v903, 64
    %v928 = vpop.permute.xlu0 %927
    %v930 = vsel %vm586, %v916, 0
    %v933 = vsel %vm586, %v922, 0
    %v936 = vsel %vm586, %v924, 0
    %v939 = vsel %vm586, %v926, 0
    %v942 = vsel %vm586, %v928, 0
    %944 = vmatprep.subr.bf16.mxu0 0
    %945 = vmatpush1.bf16.xpose.msra.mxu0 %v933
    %946 = vmatprep.subr.bf16.mxu0 0
    %947 = vmatpush1.bf16.xpose.msra.mxu0 %v936
    %948 = vmatprep.subr.bf16.mxu0 0
    %949 = vmatpush1.bf16.xpose.msra.mxu0 %v939
    %950 = vmatprep.subr.bf16.mxu0 0
    %951 = vmatpush1.bf16.xpose.msra.mxu0 %v942
    %952 = vmatprep.subr.bf16.mxu0 0
    %953 = vmatpush1.bf16.xpose.msra.mxu0 0
    %954 = vmatprep.subr.bf16.mxu0 0
    %955 = vmatpush1.bf16.xpose.msra.mxu0 0
    %956 = vmatprep.subr.bf16.mxu0 0
    %957 = vmatpush1.bf16.xpose.msra.mxu0 0
    %958 = vmatprep.subr.bf16.mxu0 0
    %959 = vmatpush1.bf16.xpose.msra.mxu0 0
    %960 = vmatprep.subr.bf16.mxu0 0
    %961 = vmatpush1.bf16.xpose.msra.mxu0 0
    %962 = vmatprep.subr.bf16.mxu0 0
    %963 = vmatpush1.bf16.xpose.msra.mxu0 0
    %964 = vmatprep.subr.bf16.mxu0 0
    %965 = vmatpush1.bf16.xpose.msra.mxu0 0
    %966 = vmatprep.subr.bf16.mxu0 0
    %967 = vmatpush1.bf16.xpose.msra.mxu0 0
    %968 = vmatprep.subr.bf16.mxu0 0
    %969 = vmatpush1.bf16.xpose.msra.mxu0 0
    %970 = vmatprep.subr.bf16.mxu0 0
    %971 = vmatpush1.bf16.xpose.msra.mxu0 0
    %972 = vmatprep.subr.bf16.mxu0 0
    %973 = vmatpush1.bf16.xpose.msra.mxu0 0
    %974 = vmatprep.subr.bf16.mxu0 0
    %975 = vmatpush1.bf16.xpose.msra.mxu0 0
    %976 = vmatprep.mubr.bf16.mxu0 0
    %977 = vmatmul.mubr.bf16.gmra.mrb[0].mxu0 %v930
    %v978 = vpop.f32.mrb[0].mxu0
    %v979 = vadd.f32 %v640, %v978
    %v980 = vpop.f32.mrb[0].mxu0
    %v981 = vpop.f32.mrb[0].mxu0
    %v982 = vadd.f32 %v641, %v981
    %v983 = vpop.f32.mrb[0].mxu0
    %984 = vdwg.mxu0
    %v985 = vsel %vm586, %v979, -inf
    %986 = vmax.xlane.f32.xlu0 %v985
    %v987 = vpop.xlane.xlu0 %986
    %v988 = vsel %vm586, %v982, -inf
    %989 = vmax.xlane.f32.xlu0 %v988
    %v990 = vpop.xlane.xlu0 %989
    %v991 = vsub.f32 %v979, %v987
    %v992 = vsub.f32 %v982, %v990
    %v993 = vmul.f32 %v991, 1.442695
    %v994 = vpow.pop %v993
    %v995 = vmul.f32 %v992, 1.442695
    %v996 = vpow.pop %v995
    %v997 = vpack.c.bf16 %v996, %v994
    %v999 = vsel %vm586, %v997, 0
    %1001 = vmatprep.subr.bf16.mxu0 0
    %1002 = vmatpush1.bf16.msra.mxu0 %v696
    %1003 = vmatprep.subr.bf16.mxu0 0
    %1004 = vmatpush1.bf16.msra.mxu0 %v697
    %1005 = vmatprep.subr.bf16.mxu0 0
    %1006 = vmatpush1.bf16.msra.mxu0 %v698
    %1007 = vmatprep.subr.bf16.mxu0 0
    %1008 = vmatpush1.bf16.msra.mxu0 %v699
    %1009 = vmatprep.subr.bf16.mxu0 0
    %1010 = vmatpush1.bf16.msra.mxu0 0
    %1011 = vmatprep.subr.bf16.mxu0 0
    %1012 = vmatpush1.bf16.msra.mxu0 0
    %1013 = vmatprep.subr.bf16.mxu0 0
    %1014 = vmatpush1.bf16.msra.mxu0 0
    %1015 = vmatprep.subr.bf16.mxu0 0
    %1016 = vmatpush1.bf16.msra.mxu0 0
    %1017 = vmatprep.subr.bf16.mxu0 0
    %1018 = vmatpush1.bf16.msra.mxu0 0
    %1019 = vmatprep.subr.bf16.mxu0 0
    %1020 = vmatpush1.bf16.msra.mxu0 0
    %1021 = vmatprep.subr.bf16.mxu0 0
    %1022 = vmatpush1.bf16.msra.mxu0 0
    %1023 = vmatprep.subr.bf16.mxu0 0
    %1024 = vmatpush1.bf16.msra.mxu0 0
    %1025 = vmatprep.subr.bf16.mxu0 0
    %1026 = vmatpush1.bf16.msra.mxu0 0
    %1027 = vmatprep.subr.bf16.mxu0 0
    %1028 = vmatpush1.bf16.msra.mxu0 0
    %1029 = vmatprep.subr.bf16.mxu0 0
    %1030 = vmatpush1.bf16.msra.mxu0 0
    %1031 = vmatprep.subr.bf16.mxu0 0
    %1032 = vmatpush1.bf16.msra.mxu0 0
    %1033 = vmatprep.mubr.bf16.mxu0 0
    %1034 = vmatmul.mubr.bf16.gmra.mrb[0].mxu0 %v999
    %v1035 = vpop.f32.mrb[0].mxu0
    %v1036 = vadd.f32 1e-30, %v1035
    %v1037 = vpop.f32.mrb[0].mxu0
    %v1038 = vpop.f32.mrb[0].mxu0
    %v1039 = vadd.f32 1e-30, %v1038
    %v1040 = vpop.f32.mrb[0].mxu0
    %1041 = vdwg.mxu0
    %v1042 = vrcp.pop %v1036
    %v1043 = vrcp.pop %v1039
    %v1044 = vmul.f32 %v994, %v1042
    %v1045 = vmul.f32 %v996, %v1043
    %v1046 = vpack.c.bf16 %v1045, %v1044
    %v1048 = vsel %vm586, %v1046, 0
    %1050 = vmatprep.subr.bf16.mxu0 0
    %1051 = vmatpush1.bf16.msra.mxu0 %v912
    %1052 = vmatprep.subr.bf16.mxu0 0
    %1053 = vmatpush1.bf16.msra.mxu0 %v913
    %1054 = vmatprep.subr.bf16.mxu0 0
    %1055 = vmatpush1.bf16.msra.mxu0 %v914
    %1056 = vmatprep.subr.bf16.mxu0 0
    %1057 = vmatpush1.bf16.msra.mxu0 %v915
    %1058 = vmatprep.subr.bf16.mxu0 0
    %1059 = vmatpush1.bf16.msra.mxu0 0
    %1060 = vmatprep.subr.bf16.mxu0 0
    %1061 = vmatpush1.bf16.msra.mxu0 0
    %1062 = vmatprep.subr.bf16.mxu0 0
    %1063 = vmatpush1.bf16.msra.mxu0 0
    %1064 = vmatprep.subr.bf16.mxu0 0
    %1065 = vmatpush1.bf16.msra.mxu0 0
    %1066 = vmatprep.subr.bf16.mxu0 0
    %1067 = vmatpush1.bf16.msra.mxu0 0
    %1068 = vmatprep.subr.bf16.mxu0 0
    %1069 = vmatpush1.bf16.msra.mxu0 0
    %1070 = vmatprep.subr.bf16.mxu0 0
    %1071 = vmatpush1.bf16.msra.mxu0 0
    %1072 = vmatprep.subr.bf16.mxu0 0
    %1073 = vmatpush1.bf16.msra.mxu0 0
    %1074 = vmatprep.subr.bf16.mxu0 0
    %1075 = vmatpush1.bf16.msra.mxu0 0
    %1076 = vmatprep.subr.bf16.mxu0 0
    %1077 = vmatpush1.bf16.msra.mxu0 0
    %1078 = vmatprep.subr.bf16.mxu0 0
    %1079 = vmatpush1.bf16.msra.mxu0 0
    %1080 = vmatprep.subr.bf16.mxu0 0
    %1081 = vmatpush1.bf16.msra.mxu0 0
    %1082 = vmatprep.mubr.bf16.mxu0 0
    %1083 = vmatmul.mubr.bf16.gmra.mrb[0].mxu0 %v1048
    %v1084 = vpop.f32.mrb[0].mxu0
    %v1085 = vadd.f32 0.0, %v1084
    %v1086 = vpop.f32.mrb[0].mxu0
    %v1087 = vpop.f32.mrb[0].mxu0
    %v1088 = vadd.f32 0.0, %v1087
    %v1089 = vpop.f32.mrb[0].mxu0
    %1090 = vdwg.mxu0
    %v1091 = vpack.c.bf16 %v1088, %v1085
    %v1092 = vld [vmem:[%s3] sm:$0xf]
    %v1093 = vld [vmem:[%s3 + $0x4] sm:$0xf]
    %v1094 = vld [vmem:[%s3 + $0x8] sm:$0xf]
    %v1095 = vld [vmem:[%s3 + $0xc] sm:$0xf]
    %v1096 = vld [vmem:[%s3 + $0x10] sm:$0xf]
    %v1097 = vld [vmem:[%s3 + $0x14] sm:$0xf]
    %v1098 = vld [vmem:[%s3 + $0x18] sm:$0xf]
    %v1099 = vld [vmem:[%s3 + $0x1c] sm:$0xf]
    %v1100 = vld [vmem:[%s6 + $0x11] sm:$0x1]
    %v1101 = vlaneseq
    %v1102 = vshrl.u32 %v1101, 7
    %v1103 = vsub.s32 0, %v1102
    %v1104 = vrot.slane %v1100, %v1103
    %v1113 = vunpack.c.l.b16 %v1092
    %v1114 = vunpack.c.l.b16 %v1093
    %v1115 = vunpack.c.l.b16 %v1094
    %v1116 = vunpack.c.l.b16 %v1095
    %v1117 = vunpack.c.l.b16 %v1096
    %v1118 = vunpack.c.l.b16 %v1097
    %v1119 = vunpack.c.l.b16 %v1098
    %v1120 = vunpack.c.l.b16 %v1099
    %v1121 = vpack.c.b16 %v1114, %v1113
    %v1122 = vpack.c.b16 %v1116, %v1115
    %v1123 = vpack.c.b16 %v1118, %v1117
    %v1124 = vpack.c.b16 %v1120, %v1119
    %v1130 = vsel %vm586, %v1091, 0
    %1132 = vmatprep.subr.bf16.mxu0 0
    %1133 = vmatpush1.bf16.msra.mxu0 %v1121
    %1134 = vmatprep.subr.bf16.mxu0 0
    %1135 = vmatpush1.bf16.msra.mxu0 %v1122
    %1136 = vmatprep.subr.bf16.mxu0 0
    %1137 = vmatpush1.bf16.msra.mxu0 %v1123
    %1138 = vmatprep.subr.bf16.mxu0 0
    %1139 = vmatpush1.bf16.msra.mxu0 %v1124
    %1140 = vmatprep.subr.bf16.mxu0 0
    %1141 = vmatpush1.bf16.msra.mxu0 0
    %1142 = vmatprep.subr.bf16.mxu0 0
    %1143 = vmatpush1.bf16.msra.mxu0 0
    %1144 = vmatprep.subr.bf16.mxu0 0
    %1145 = vmatpush1.bf16.msra.mxu0 0
    %1146 = vmatprep.subr.bf16.mxu0 0
    %1147 = vmatpush1.bf16.msra.mxu0 0
    %1148 = vmatprep.subr.bf16.mxu0 0
    %1149 = vmatpush1.bf16.msra.mxu0 0
    %1150 = vmatprep.subr.bf16.mxu0 0
    %1151 = vmatpush1.bf16.msra.mxu0 0
    %1152 = vmatprep.subr.bf16.mxu0 0
    %1153 = vmatpush1.bf16.msra.mxu0 0
    %1154 = vmatprep.subr.bf16.mxu0 0
    %1155 = vmatpush1.bf16.msra.mxu0 0
    %1156 = vmatprep.subr.bf16.mxu0 0
    %1157 = vmatpush1.bf16.msra.mxu0 0
    %1158 = vmatprep.subr.bf16.mxu0 0
    %1159 = vmatpush1.bf16.msra.mxu0 0
    %1160 = vmatprep.subr.bf16.mxu0 0
    %1161 = vmatpush1.bf16.msra.mxu0 0
    %1162 = vmatprep.subr.bf16.mxu0 0
    %1163 = vmatpush1.bf16.msra.mxu0 0
    %1164 = vmatprep.mubr.bf16.mxu0 0
    %1165 = vmatmul.mubr.bf16.gmra.mrb[0].mxu0 %v1130
    %v1166 = vpop.f32.mrb[0].mxu0
    %v1167 = vadd.f32 %v1104, %v1166
    %v1168 = vpop.f32.mrb[0].mxu0
    %v1169 = vpop.f32.mrb[0].mxu0
    %v1170 = vadd.f32 %v1104, %v1169
    %v1171 = vpop.f32.mrb[0].mxu0
    %1172 = vdwg.mxu0
    %v1173 = vadd.f32 %v624, %v1167
    %v1174 = vadd.f32 %v625, %v1170
    %v1175 = vld [vmem:[%s6 + $0x12] sm:$0x1]
    %v1176 = vld [vmem:[%s6 + $0x13] sm:$0x1]
    %v1177 = vsel %vm586, %v1173, 0.0
    %1178 = vadd.xlane.f32.xlu0 %v1177
    %v1179 = vpop.xlane.xlu0 %1178
    %v1180 = vsel %vm586, %v1174, 0.0
    %1181 = vadd.xlane.f32.xlu0 %v1180
    %v1182 = vpop.xlane.xlu0 %1181
    %v1183 = vmul.f32 %v1179, %v593
    %v1184 = vmul.f32 %v1182, %v593
    %v1185 = vsub.f32 %v1173, %v1183
    %v1186 = vsub.f32 %v1174, %v1184
    %v1187 = vmul.f32 %v1185, %v1185
    %v1188 = vmul.f32 %v1186, %v1186
    %v1189 = vsel %vm586, %v1187, 0.0
    %1190 = vadd.xlane.f32.xlu0 %v1189
    %v1191 = vpop.xlane.xlu0 %1190
    %v1192 = vsel %vm586, %v1188, 0.0
    %1193 = vadd.xlane.f32.xlu0 %v1192
    %v1194 = vpop.xlane.xlu0 %1193
    %v1195 = vmul.f32 %v1191, %v593
    %v1196 = vmul.f32 %v1194, %v593
    %v1197 = vadd.f32 %v1195, 1e-05
    %v1198 = vadd.f32 %v1196, 1e-05
    %v1199 = vrsqrt.pop %v1197
    %v1200 = vrsqrt.pop %v1198
    %v1201 = vmul.f32 %v1185, %v1199
    %v1202 = vmul.f32 %v1186, %v1200
    %v1203 = vlaneseq
    %v1204 = vshrl.u32 %v1203, 7
    %v1205 = vsub.s32 0, %v1204
    %v1206 = vrot.slane %v1175, %v1205
    %v1207 = vmul.f32 %v1201, %v1206
    %v1208 = vmul.f32 %v1202, %v1206
    %v1209 = vlaneseq
    %v1210 = vshrl.u32 %v1209, 7
    %v1211 = vsub.s32 0, %v1210
    %v1212 = vrot.slane %v1176, %v1211
    %v1213 = vadd.f32 %v1207, %v1212
    %v1214 = vadd.f32 %v1208, %v1212
    %v1215 = vpack.c.bf16 %v1214, %v1213
    %v1216 = vld [vmem:[%s4] sm:$0xff]
    %v1217 = vld [vmem:[%s4 + $0x8] sm:$0xff]
    %v1218 = vld [vmem:[%s4 + $0x10] sm:$0xff]
    %v1219 = vld [vmem:[%s4 + $0x18] sm:$0xff]
    %v1220 = vld [vmem:[%s4 + $0x20] sm:$0xff]
    %v1221 = vld [vmem:[%s4 + $0x28] sm:$0xff]
    %v1222 = vld [vmem:[%s4 + $0x30] sm:$0xff]
    %v1223 = vld [vmem:[%s4 + $0x38] sm:$0xff]
    %v1224 = vld [vmem:[%s7] ss:$2 sm:$0x3]
    %v1226 = vlaneseq
    %v1227 = vshrl.u32 %v1226, 7
    %v1228 = vsub.s32 0, %v1227
    %v1229 = vrot.slane %v1224, %v1228
    %v1230 = vlaneseq
    %v1231 = vshrl.u32 %v1230, 7
    %v1232 = vsub.s32 1, %v1231
    %v1233 = vrot.slane %v1224, %v1232
    %v1244 = vunpack.c.l.b16 %v1216
    %v1245 = vunpack.c.h.b16 %v1216
    %v1246 = vunpack.c.l.b16 %v1217
    %v1247 = vunpack.c.h.b16 %v1217
    %v1248 = vunpack.c.l.b16 %v1218
    %v1249 = vunpack.c.h.b16 %v1218
    %v1250 = vunpack.c.l.b16 %v1219
    %v1251 = vunpack.c.h.b16 %v1219
    %v1252 = vunpack.c.l.b16 %v1220
    %v1253 = vunpack.c.h.b16 %v1220
    %v1254 = vunpack.c.l.b16 %v1221
    %v1255 = vunpack.c.h.b16 %v1221
    %v1256 = vunpack.c.l.b16 %v1222
    %v1257 = vunpack.c.h.b16 %v1222
    %v1258 = vunpack.c.l.b16 %v1223
    %v1259 = vunpack.c.h.b16 %v1223
    %v1260 = vpack.c.b16 %v1246, %v1244
    %v1261 = vpack.c.b16 %v1247, %v1245
    %v1262 = vpack.c.b16 %v1250, %v1248
    %v1263 = vpack.c.b16 %v1251, %v1249
    %v1264 = vpack.c.b16 %v1254, %v1252
    %v1265 = vpack.c.b16 %v1255, %v1253
    %v1266 = vpack.c.b16 %v1258, %v1256
    %v1267 = vpack.c.b16 %v1259, %v1257
    %v1277 = vsel %vm586, %v1215, 0
    %1279 = vmatprep.subr.bf16.mxu0 %v1261
    %1280 = vmatpush1.bf16.msra.mxu0 %v1260
    %1281 = vmatprep.subr.bf16.mxu0 %v1263
    %1282 = vmatpush1.bf16.msra.mxu0 %v1262
    %1283 = vmatprep.subr.bf16.mxu0 %v1265
    %1284 = vmatpush1.bf16.msra.mxu0 %v1264
    %1285 = vmatprep.subr.bf16.mxu0 %v1267
    %1286 = vmatpush1.bf16.msra.mxu0 %v1266
    %1287 = vmatprep.subr.bf16.mxu0 0
    %1288 = vmatpush1.bf16.msra.mxu0 0
    %1289 = vmatprep.subr.bf16.mxu0 0
    %1290 = vmatpush1.bf16.msra.mxu0 0
    %1291 = vmatprep.subr.bf16.mxu0 0
    %1292 = vmatpush1.bf16.msra.mxu0 0
    %1293 = vmatprep.subr.bf16.mxu0 0
    %1294 = vmatpush1.bf16.msra.mxu0 0
    %1295 = vmatprep.subr.bf16.mxu0 0
    %1296 = vmatpush1.bf16.msra.mxu0 0
    %1297 = vmatprep.subr.bf16.mxu0 0
    %1298 = vmatpush1.bf16.msra.mxu0 0
    %1299 = vmatprep.subr.bf16.mxu0 0
    %1300 = vmatpush1.bf16.msra.mxu0 0
    %1301 = vmatprep.subr.bf16.mxu0 0
    %1302 = vmatpush1.bf16.msra.mxu0 0
    %1303 = vmatprep.subr.bf16.mxu0 0
    %1304 = vmatpush1.bf16.msra.mxu0 0
    %1305 = vmatprep.subr.bf16.mxu0 0
    %1306 = vmatpush1.bf16.msra.mxu0 0
    %1307 = vmatprep.subr.bf16.mxu0 0
    %1308 = vmatpush1.bf16.msra.mxu0 0
    %1309 = vmatprep.subr.bf16.mxu0 0
    %1310 = vmatpush1.bf16.msra.mxu0 0
    %1311 = vmatprep.mubr.bf16.mxu0 0
    %1312 = vmatmul.mubr.bf16.gmra.mrb[0].mxu0 %v1277
    %v1313 = vpop.f32.mrb[0].mxu0
    %v1314 = vadd.f32 %v1229, %v1313
    %v1315 = vpop.f32.mrb[0].mxu0
    %v1316 = vadd.f32 %v1233, %v1315
    %v1317 = vpop.f32.mrb[0].mxu0
    %v1318 = vadd.f32 %v1229, %v1317
    %v1319 = vpop.f32.mrb[0].mxu0
    %v1320 = vadd.f32 %v1233, %v1319
    %1321 = vdwg.mxu0
    %v1322 = vmul.f32 %v1314, -1.702
    %v1323 = vmul.f32 %v1316, -1.702
    %v1324 = vmul.f32 %v1318, -1.702
    %v1325 = vmul.f32 %v1320, -1.702
    %v1326 = vmul.f32 %v1322, 1.442695
    %v1327 = vpow.pop %v1326
    %v1328 = vmul.f32 %v1323, 1.442695
    %v1329 = vpow.pop %v1328
    %v1330 = vmul.f32 %v1324, 1.442695
    %v1331 = vpow.pop %v1330
    %v1332 = vmul.f32 %v1325, 1.442695
    %v1333 = vpow.pop %v1332
    %v1334 = vadd.f32 %v1327, 1.0
    %v1335 = vadd.f32 %v1329, 1.0
    %v1336 = vadd.f32 %v1331, 1.0
    %v1337 = vadd.f32 %v1333, 1.0
    %v1338 = vrcp.pop %v1334
    %v1339 = vmul.f32 1.0, %v1338
    %v1340 = vrcp.pop %v1335
    %v1341 = vmul.f32 1.0, %v1340
    %v1342 = vrcp.pop %v1336
    %v1343 = vmul.f32 1.0, %v1342
    %v1344 = vrcp.pop %v1337
    %v1345 = vmul.f32 1.0, %v1344
    %v1346 = vmul.f32 %v1314, %v1339
    %v1347 = vmul.f32 %v1316, %v1341
    %v1348 = vmul.f32 %v1318, %v1343
    %v1349 = vmul.f32 %v1320, %v1345
    %v1350 = vpack.c.bf16 %v1348, %v1346
    %v1351 = vpack.c.bf16 %v1349, %v1347
    %v1352 = vld [vmem:[%s5] sm:$0xf]
    %v1353 = vld [vmem:[%s5 + $0x4] sm:$0xf]
    %v1354 = vld [vmem:[%s5 + $0x8] sm:$0xf]
    %v1355 = vld [vmem:[%s5 + $0xc] sm:$0xf]
    %v1356 = vld [vmem:[%s5 + $0x10] sm:$0xf]
    %v1357 = vld [vmem:[%s5 + $0x14] sm:$0xf]
    %v1358 = vld [vmem:[%s5 + $0x18] sm:$0xf]
    %v1359 = vld [vmem:[%s5 + $0x1c] sm:$0xf]
    %v1360 = vld [vmem:[%s5 + $0x20] sm:$0xf]
    %v1361 = vld [vmem:[%s5 + $0x24] sm:$0xf]
    %v1362 = vld [vmem:[%s5 + $0x28] sm:$0xf]
    %v1363 = vld [vmem:[%s5 + $0x2c] sm:$0xf]
    %v1364 = vld [vmem:[%s5 + $0x30] sm:$0xf]
    %v1365 = vld [vmem:[%s5 + $0x34] sm:$0xf]
    %v1366 = vld [vmem:[%s5 + $0x38] sm:$0xf]
    %v1367 = vld [vmem:[%s5 + $0x3c] sm:$0xf]
    %v1368 = vld [vmem:[%s5 + $0x40] sm:$0xf]
    %v1369 = vld [vmem:[%s5 + $0x44] sm:$0xf]
    %v1370 = vld [vmem:[%s5 + $0x48] sm:$0xf]
    %v1371 = vld [vmem:[%s5 + $0x4c] sm:$0xf]
    %v1372 = vld [vmem:[%s5 + $0x50] sm:$0xf]
    %v1373 = vld [vmem:[%s5 + $0x54] sm:$0xf]
    %v1374 = vld [vmem:[%s5 + $0x58] sm:$0xf]
    %v1375 = vld [vmem:[%s5 + $0x5c] sm:$0xf]
    %v1376 = vld [vmem:[%s5 + $0x60] sm:$0xf]
    %v1377 = vld [vmem:[%s5 + $0x64] sm:$0xf]
    %v1378 = vld [vmem:[%s5 + $0x68] sm:$0xf]
    %v1379 = vld [vmem:[%s5 + $0x6c] sm:$0xf]
    %v1380 = vld [vmem:[%s5 + $0x70] sm:$0xf]
    %v1381 = vld [vmem:[%s5 + $0x74] sm:$0xf]
    %v1382 = vld [vmem:[%s5 + $0x78] sm:$0xf]
    %v1383 = vld [vmem:[%s5 + $0x7c] sm:$0xf]
    %v1416 = vunpack.c.l.b16 %v1352
    %v1417 = vunpack.c.l.b16 %v1353
    %v1418 = vunpack.c.l.b16 %v1354
    %v1419 = vunpack.c.l.b16 %v1355
    %v1420 = vunpack.c.l.b16 %v1356
    %v1421 = vunpack.c.l.b16 %v1357
    %v1422 = vunpack.c.l.b16 %v1358
    %v1423 = vunpack.c.l.b16 %v1359
    %v1424 = vunpack.c.l.b16 %v1360
    %v1425 = vunpack.c.l.b16 %v1361
    %v1426 = vunpack.c.l.b16 %v1362
    %v1427 = vunpack.c.l.b16 %v1363
    %v1428 = vunpack.c.l.b16 %v1364
    %v1429 = vunpack.c.l.b16 %v1365
    %v1430 = vunpack.c.l.b16 %v1366
    %v1431 = vunpack.c.l.b16 %v1367
    %v1432 = vunpack.c.l.b16 %v1368
    %v1433 = vunpack.c.l.b16 %v1369
    %v1434 = vunpack.c.l.b16 %v1370
    %v1435 = vunpack.c.l.b16 %v1371
    %v1436 = vunpack.c.l.b16 %v1372
    %v1437 = vunpack.c.l.b16 %v1373
    %v1438 = vunpack.c.l.b16 %v1374
    %v1439 = vunpack.c.l.b16 %v1375
    %v1440 = vunpack.c.l.b16 %v1376
    %v1441 = vunpack.c.l.b16 %v1377
    %v1442 = vunpack.c.l.b16 %v1378
    %v1443 = vunpack.c.l.b16 %v1379
    %v1444 = vunpack.c.l.b16 %v1380
    %v1445 = vunpack.c.l.b16 %v1381
    %v1446 = vunpack.c.l.b16 %v1382
    %v1447 = vunpack.c.l.b16 %v1383
    %v1448 = vpack.c.b16 %v1417, %v1416
    %v1449 = vpack.c.b16 %v1419, %v1418
    %v1450 = vpack.c.b16 %v1421, %v1420
    %v1451 = vpack.c.b16 %v1423, %v1422
    %v1452 = vpack.c.b16 %v1425, %v1424
    %v1453 = vpack.c.b16 %v1427, %v1426
    %v1454 = vpack.c.b16 %v1429, %v1428
    %v1455 = vpack.c.b16 %v1431, %v1430
    %v1456 = vpack.c.b16 %v1433, %v1432
    %v1457 = vpack.c.b16 %v1435, %v1434
    %v1458 = vpack.c.b16 %v1437, %v1436
    %v1459 = vpack.c.b16 %v1439, %v1438
    %v1460 = vpack.c.b16 %v1441, %v1440
    %v1461 = vpack.c.b16 %v1443, %v1442
    %v1462 = vpack.c.b16 %v1445, %v1444
    %v1463 = vpack.c.b16 %v1447, %v1446
    %1480 = vmatprep.subr.bf16.mxu0 0
    %1481 = vmatpush1.bf16.msra.mxu0 %v1448
    %1482 = vmatprep.subr.bf16.mxu0 0
    %1483 = vmatpush1.bf16.msra.mxu0 %v1449
    %1484 = vmatprep.subr.bf16.mxu0 0
    %1485 = vmatpush1.bf16.msra.mxu0 %v1450
    %1486 = vmatprep.subr.bf16.mxu0 0
    %1487 = vmatpush1.bf16.msra.mxu0 %v1451
    %1488 = vmatprep.subr.bf16.mxu0 0
    %1489 = vmatpush1.bf16.msra.mxu0 %v1452
    %1490 = vmatprep.subr.bf16.mxu0 0
    %1491 = vmatpush1.bf16.msra.mxu0 %v1453
    %1492 = vmatprep.subr.bf16.mxu0 0
    %1493 = vmatpush1.bf16.msra.mxu0 %v1454
    %1494 = vmatprep.subr.bf16.mxu0 0
    %1495 = vmatpush1.bf16.msra.mxu0 %v1455
    %1496 = vmatprep.subr.bf16.mxu0 0
    %1497 = vmatpush1.bf16.msra.mxu0 %v1456
    %1498 = vmatprep.subr.bf16.mxu0 0
    %1499 = vmatpush1.bf16.msra.mxu0 %v1457
    %1500 = vmatprep.subr.bf16.mxu0 0
    %1501 = vmatpush1.bf16.msra.mxu0 %v1458
    %1502 = vmatprep.subr.bf16.mxu0 0
    %1503 = vmatpush1.bf16.msra.mxu0 %v1459
    %1504 = vmatprep.subr.bf16.mxu0 0
    %1505 = vmatpush1.bf16.msra.mxu0 %v1460
    %1506 = vmatprep.subr.bf16.mxu0 0
    %1507 = vmatpush1.bf16.msra.mxu0 %v1461
    %1508 = vmatprep.subr.bf16.mxu0 0
    %1509 = vmatpush1.bf16.msra.mxu0 %v1462
    %1510 = vmatprep.subr.bf16.mxu0 0
    %1511 = vmatpush1.bf16.msra.mxu0 %v1463
    %1512 = vmatprep.mubr.bf16.mxu0 %v1351
    %1513 = vmatmul.mubr.bf16.gmra.mrb[0].mxu0 %v1350
    %v1514 = vpop.f32.mrb[0].mxu0
    %v1515 = vadd.f32 0.0, %v1514
    %v1516 = vpop.f32.mrb[0].mxu0
    %v1517 = vpop.f32.mrb[0].mxu0
    %v1518 = vadd.f32 0.0, %v1517
    %v1519 = vpop.f32.mrb[0].mxu0
    %1520 = vdwg.mxu0
    %v1521 = vadd.f32 %v1173, %v1515
    %v1522 = vadd.f32 %v1174, %v1518
    %v1523 = vld [vmem:[%s6 + $0x14] sm:$0x1]
    %v1524 = vlaneseq
    %v1525 = vshrl.u32 %v1524, 7
    %v1526 = vsub.s32 0, %v1525
    %v1527 = vrot.slane %v1523, %v1526
    %v1528 = vadd.f32 %v1521, %v1527
    %v1529 = vadd.f32 %v1522, %v1527
    %v1530 = vld [vmem:[%s6 + $0x15] sm:$0x1]
    %v1531 = vld [vmem:[%s6 + $0x16] sm:$0x1]
    %v1532 = vsel %vm586, %v1528, 0.0
    %1533 = vadd.xlane.f32.xlu0 %v1532
    %v1534 = vpop.xlane.xlu0 %1533
    %v1535 = vsel %vm586, %v1529, 0.0
    %1536 = vadd.xlane.f32.xlu0 %v1535
    %v1537 = vpop.xlane.xlu0 %1536
    %v1538 = vmul.f32 %v1534, %v593
    %v1539 = vmul.f32 %v1537, %v593
    %v1540 = vsub.f32 %v1528, %v1538
    %v1541 = vsub.f32 %v1529, %v1539
    %v1542 = vmul.f32 %v1540, %v1540
    %v1543 = vmul.f32 %v1541, %v1541
    %v1544 = vsel %vm586, %v1542, 0.0
    %1545 = vadd.xlane.f32.xlu0 %v1544
    %v1546 = vpop.xlane.xlu0 %1545
    %v1547 = vsel %vm586, %v1543, 0.0
    %1548 = vadd.xlane.f32.xlu0 %v1547
    %v1549 = vpop.xlane.xlu0 %1548
    %v1550 = vmul.f32 %v1546, %v593
    %v1551 = vmul.f32 %v1549, %v593
    %v1552 = vadd.f32 %v1550, 1e-05
    %v1553 = vadd.f32 %v1551, 1e-05
    %v1554 = vrsqrt.pop %v1552
    %v1555 = vrsqrt.pop %v1553
    %v1556 = vmul.f32 %v1540, %v1554
    %v1557 = vmul.f32 %v1541, %v1555
    %v1558 = vlaneseq
    %v1559 = vshrl.u32 %v1558, 7
    %v1560 = vsub.s32 0, %v1559
    %v1561 = vrot.slane %v1530, %v1560
    %v1562 = vmul.f32 %v1556, %v1561
    %v1563 = vmul.f32 %v1557, %v1561
    %v1564 = vlaneseq
    %v1565 = vshrl.u32 %v1564, 7
    %v1566 = vsub.s32 0, %v1565
    %v1567 = vrot.slane %v1531, %v1566
    %v1568 = vadd.f32 %v1562, %v1567
    %v1569 = vadd.f32 %v1563, %v1567
    %v1570 = vpack.c.bf16 %v1569, %v1568
    %s1571 = scalar_lea.vmem %s2, 64
    %v1572 = vld [vmem:[%s1571] sm:$0xff]
    %v1573 = vld [vmem:[%s1571 + $0x8] sm:$0xff]
    %v1574 = vld [vmem:[%s1571 + $0x10] sm:$0xff]
    %v1575 = vld [vmem:[%s1571 + $0x18] sm:$0xff]
    %v1576 = vld [vmem:[%s1571 + $0x20] sm:$0xff]
    %v1577 = vld [vmem:[%s1571 + $0x28] sm:$0xff]
    %v1578 = vld [vmem:[%s1571 + $0x30] sm:$0xff]
    %v1579 = vld [vmem:[%s1571 + $0x38] sm:$0xff]
    %v1588 = vunpack.c.l.b16 %v1572
    %v1589 = vunpack.c.h.b16 %v1572
    %v1590 = vunpack.c.l.b16 %v1573
    %v1591 = vunpack.c.h.b16 %v1573
    %v1592 = vunpack.c.l.b16 %v1574
    %v1593 = vunpack.c.h.b16 %v1574
    %v1594 = vunpack.c.l.b16 %v1575
    %v1595 = vunpack.c.h.b16 %v1575
    %v1596 = vunpack.c.l.b16 %v1576
    %v1597 = vunpack.c.h.b16 %v1576
    %v1598 = vunpack.c.l.b16 %v1577
    %v1599 = vunpack.c.h.b16 %v1577
    %v1600 = vunpack.c.l.b16 %v1578
    %v1601 = vunpack.c.h.b16 %v1578
    %v1602 = vunpack.c.l.b16 %v1579
    %v1603 = vunpack.c.h.b16 %v1579
    %v1604 = vpack.c.b16 %v1590, %v1588
    %v1605 = vpack.c.b16 %v1591, %v1589
    %v1606 = vpack.c.b16 %v1594, %v1592
    %v1607 = vpack.c.b16 %v1595, %v1593
    %v1608 = vpack.c.b16 %v1598, %v1596
    %v1609 = vpack.c.b16 %v1599, %v1597
    %v1610 = vpack.c.b16 %v1602, %v1600
    %v1611 = vpack.c.b16 %v1603, %v1601
    %v1621 = vsel %vm586, %v1570, 0
    %1623 = vmatprep.subr.bf16.mxu0 %v1605
    %1624 = vmatpush1.bf16.msra.mxu0 %v1604
    %1625 = vmatprep.subr.bf16.mxu0 %v1607
    %1626 = vmatpush1.bf16.msra.mxu0 %v1606
    %1627 = vmatprep.subr.bf16.mxu0 %v1609
    %1628 = vmatpush1.bf16.msra.mxu0 %v1608
    %1629 = vmatprep.subr.bf16.mxu0 %v1611
    %1630 = vmatpush1.bf16.msra.mxu0 %v1610
    %1631 = vmatprep.subr.bf16.mxu0 0
    %1632 = vmatpush1.bf16.msra.mxu0 0
    %1633 = vmatprep.subr.bf16.mxu0 0
    %1634 = vmatpush1.bf16.msra.mxu0 0
    %1635 = vmatprep.subr.bf16.mxu0 0
    %1636 = vmatpush1.bf16.msra.mxu0 0
    %1637 = vmatprep.subr.bf16.mxu0 0
    %1638 = vmatpush1.bf16.msra.mxu0 0
    %1639 = vmatprep.subr.bf16.mxu0 0
    %1640 = vmatpush1.bf16.msra.mxu0 0
    %1641 = vmatprep.subr.bf16.mxu0 0
    %1642 = vmatpush1.bf16.msra.mxu0 0
    %1643 = vmatprep.subr.bf16.mxu0 0
    %1644 = vmatpush1.bf16.msra.mxu0 0
    %1645 = vmatprep.subr.bf16.mxu0 0
    %1646 = vmatpush1.bf16.msra.mxu0 0
    %1647 = vmatprep.subr.bf16.mxu0 0
    %1648 = vmatpush1.bf16.msra.mxu0 0
    %1649 = vmatprep.subr.bf16.mxu0 0
    %1650 = vmatpush1.bf16.msra.mxu0 0
    %1651 = vmatprep.subr.bf16.mxu0 0
    %1652 = vmatpush1.bf16.msra.mxu0 0
    %1653 = vmatprep.subr.bf16.mxu0 0
    %1654 = vmatpush1.bf16.msra.mxu0 0
    %1655 = vmatprep.mubr.bf16.mxu0 0
    %1656 = vmatmul.mubr.bf16.gmra.mrb[0].mxu0 %v1621
    %v1657 = vpop.f32.mrb[0].mxu0
    %v1658 = vadd.f32 0.0, %v1657
    %v1659 = vpop.f32.mrb[0].mxu0
    %v1660 = vadd.f32 0.0, %v1659
    %v1661 = vpop.f32.mrb[0].mxu0
    %v1662 = vadd.f32 0.0, %v1661
    %v1663 = vpop.f32.mrb[0].mxu0
    %v1664 = vadd.f32 0.0, %v1663
    %1665 = vdwg.mxu0
    %v1666 = vld [vmem:[%s6 + $0x17] sm:$0x1]
    %v1667 = vlaneseq
    %v1668 = vshrl.u32 %v1667, 7
    %v1669 = vsub.s32 0, %v1668
    %v1670 = vrot.slane %v1666, %v1669
    %v1671 = vadd.f32 %v1658, %v1670
    %v1672 = vadd.f32 %v1662, %v1670
    %v1673 = vld [vmem:[%s6 + $0x18] sm:$0x1]
    %v1674 = vlaneseq
    %v1675 = vshrl.u32 %v1674, 7
    %v1676 = vsub.s32 0, %v1675
    %v1677 = vrot.slane %v1673, %v1676
    %1679 = vrot.lane.b32.xlu0 %v1677, 64
    %v1680 = vpop.permute.xlu0 %1679
    %v1682 = vadd.f32 %v1658, %v1680
    %v1683 = vadd.f32 %v1662, %v1680
    %v1684 = vld [vmem:[%s6 + $0x19] sm:$0x1]
    %v1685 = vlaneseq
    %v1686 = vshrl.u32 %v1685, 7
    %v1687 = vsub.s32 0, %v1686
    %v1688 = vrot.slane %v1684, %v1687
    %v1689 = vadd.f32 %v1660, %v1688
    %v1690 = vadd.f32 %v1664, %v1688
    %v1691 = vmul.f32 %v1682, %v869
    %v1692 = vmul.f32 %v1682, %v871
    %v1693 = vmul.f32 %v1682, %v873
    %v1694 = vmul.f32 %v1682, %v875
    %v1695 = vmul.f32 %v1683, %v877
    %v1696 = vmul.f32 %v1683, %v879
    %v1697 = vmul.f32 %v1683, %v881
    %v1698 = vmul.f32 %v1683, %v883
    %v1699 = vpack.c.bf16 %v1692, %v1691
    %v1700 = vpack.c.bf16 %v1694, %v1693
    %v1701 = vpack.c.bf16 %v1696, %v1695
    %v1702 = vpack.c.bf16 %v1698, %v1697
    %v1703 = vmul.f32 %v1689, %v671
    %v1704 = vmul.f32 %v1689, %v672
    %v1705 = vmul.f32 %v1689, %v673
    %v1706 = vmul.f32 %v1689, %v674
    %v1707 = vmul.f32 %v1690, %v675
    %v1708 = vmul.f32 %v1690, %v676
    %v1709 = vmul.f32 %v1690, %v677
    %v1710 = vmul.f32 %v1690, %v678
    %v1711 = vpack.c.bf16 %v1704, %v1703
    %v1712 = vpack.c.bf16 %v1706, %v1705
    %v1713 = vpack.c.bf16 %v1708, %v1707
    %v1714 = vpack.c.bf16 %v1710, %v1709
    %v1715 = vpack.c.bf16 %v1672, %v1671
    %1720 = vrot.lane.b32.xlu0 %v1699, 64
    %v1721 = vpop.permute.xlu0 %1720
    %1722 = vrot.lane.b32.xlu0 %v1700, 64
    %v1723 = vpop.permute.xlu0 %1722
    %1724 = vrot.lane.b32.xlu0 %v1701, 64
    %v1725 = vpop.permute.xlu0 %1724
    %1726 = vrot.lane.b32.xlu0 %v1702, 64
    %v1727 = vpop.permute.xlu0 %1726
    %v1729 = vsel %vm586, %v1715, 0
    %v1732 = vsel %vm586, %v1721, 0
    %v1735 = vsel %vm586, %v1723, 0
    %v1738 = vsel %vm586, %v1725, 0
    %v1741 = vsel %vm586, %v1727, 0
    %1743 = vmatprep.subr.bf16.mxu0 0
    %1744 = vmatpush1.bf16.xpose.msra.mxu0 %v1732
    %1745 = vmatprep.subr.bf16.mxu0 0
    %1746 = vmatpush1.bf16.xpose.msra.mxu0 %v1735
    %1747 = vmatprep.subr.bf16.mxu0 0
    %1748 = vmatpush1.bf16.xpose.msra.mxu0 %v1738
    %1749 = vmatprep.subr.bf16.mxu0 0
    %1750 = vmatpush1.bf16.xpose.msra.mxu0 %v1741
    %1751 = vmatprep.subr.bf16.mxu0 0
    %1752 = vmatpush1.bf16.xpose.msra.mxu0 0
    %1753 = vmatprep.subr.bf16.mxu0 0
    %1754 = vmatpush1.bf16.xpose.msra.mxu0 0
    %1755 = vmatprep.subr.bf16.mxu0 0
    %1756 = vmatpush1.bf16.xpose.msra.mxu0 0
    %1757 = vmatprep.subr.bf16.mxu0 0
    %1758 = vmatpush1.bf16.xpose.msra.mxu0 0
    %1759 = vmatprep.subr.bf16.mxu0 0
    %1760 = vmatpush1.bf16.xpose.msra.mxu0 0
    %1761 = vmatprep.subr.bf16.mxu0 0
    %1762 = vmatpush1.bf16.xpose.msra.mxu0 0
    %1763 = vmatprep.subr.bf16.mxu0 0
    %1764 = vmatpush1.bf16.xpose.msra.mxu0 0
    %1765 = vmatprep.subr.bf16.mxu0 0
    %1766 = vmatpush1.bf16.xpose.msra.mxu0 0
    %1767 = vmatprep.subr.bf16.mxu0 0
    %1768 = vmatpush1.bf16.xpose.msra.mxu0 0
    %1769 = vmatprep.subr.bf16.mxu0 0
    %1770 = vmatpush1.bf16.xpose.msra.mxu0 0
    %1771 = vmatprep.subr.bf16.mxu0 0
    %1772 = vmatpush1.bf16.xpose.msra.mxu0 0
    %1773 = vmatprep.subr.bf16.mxu0 0
    %1774 = vmatpush1.bf16.xpose.msra.mxu0 0
    %1775 = vmatprep.mubr.bf16.mxu0 0
    %1776 = vmatmul.mubr.bf16.gmra.mrb[0].mxu0 %v1729
    %v1777 = vpop.f32.mrb[0].mxu0
    %v1778 = vadd.f32 %v640, %v1777
    %v1779 = vpop.f32.mrb[0].mxu0
    %v1780 = vpop.f32.mrb[0].mxu0
    %v1781 = vadd.f32 %v641, %v1780
    %v1782 = vpop.f32.mrb[0].mxu0
    %1783 = vdwg.mxu0
    %v1784 = vsel %vm586, %v1778, -inf
    %1785 = vmax.xlane.f32.xlu0 %v1784
    %v1786 = vpop.xlane.xlu0 %1785
    %v1787 = vsel %vm586, %v1781, -inf
    %1788 = vmax.xlane.f32.xlu0 %v1787
    %v1789 = vpop.xlane.xlu0 %1788
    %v1790 = vsub.f32 %v1778, %v1786
    %v1791 = vsub.f32 %v1781, %v1789
    %v1792 = vmul.f32 %v1790, 1.442695
    %v1793 = vpow.pop %v1792
    %v1794 = vmul.f32 %v1791, 1.442695
    %v1795 = vpow.pop %v1794
    %v1796 = vpack.c.bf16 %v1795, %v1793
    %v1798 = vsel %vm586, %v1796, 0
    %1800 = vmatprep.subr.bf16.mxu0 0
    %1801 = vmatpush1.bf16.msra.mxu0 %v696
    %1802 = vmatprep.subr.bf16.mxu0 0
    %1803 = vmatpush1.bf16.msra.mxu0 %v697
    %1804 = vmatprep.subr.bf16.mxu0 0
    %1805 = vmatpush1.bf16.msra.mxu0 %v698
    %1806 = vmatprep.subr.bf16.mxu0 0
    %1807 = vmatpush1.bf16.msra.mxu0 %v699
    %1808 = vmatprep.subr.bf16.mxu0 0
    %1809 = vmatpush1.bf16.msra.mxu0 0
    %1810 = vmatprep.subr.bf16.mxu0 0
    %1811 = vmatpush1.bf16.msra.mxu0 0
    %1812 = vmatprep.subr.bf16.mxu0 0
    %1813 = vmatpush1.bf16.msra.mxu0 0
    %1814 = vmatprep.subr.bf16.mxu0 0
    %1815 = vmatpush1.bf16.msra.mxu0 0
    %1816 = vmatprep.subr.bf16.mxu0 0
    %1817 = vmatpush1.bf16.msra.mxu0 0
    %1818 = vmatprep.subr.bf16.mxu0 0
    %1819 = vmatpush1.bf16.msra.mxu0 0
    %1820 = vmatprep.subr.bf16.mxu0 0
    %1821 = vmatpush1.bf16.msra.mxu0 0
    %1822 = vmatprep.subr.bf16.mxu0 0
    %1823 = vmatpush1.bf16.msra.mxu0 0
    %1824 = vmatprep.subr.bf16.mxu0 0
    %1825 = vmatpush1.bf16.msra.mxu0 0
    %1826 = vmatprep.subr.bf16.mxu0 0
    %1827 = vmatpush1.bf16.msra.mxu0 0
    %1828 = vmatprep.subr.bf16.mxu0 0
    %1829 = vmatpush1.bf16.msra.mxu0 0
    %1830 = vmatprep.subr.bf16.mxu0 0
    %1831 = vmatpush1.bf16.msra.mxu0 0
    %1832 = vmatprep.mubr.bf16.mxu0 0
    %1833 = vmatmul.mubr.bf16.gmra.mrb[0].mxu0 %v1798
    %v1834 = vpop.f32.mrb[0].mxu0
    %v1835 = vadd.f32 1e-30, %v1834
    %v1836 = vpop.f32.mrb[0].mxu0
    %v1837 = vpop.f32.mrb[0].mxu0
    %v1838 = vadd.f32 1e-30, %v1837
    %v1839 = vpop.f32.mrb[0].mxu0
    %1840 = vdwg.mxu0
    %v1841 = vrcp.pop %v1835
    %v1842 = vrcp.pop %v1838
    %v1843 = vmul.f32 %v1793, %v1841
    %v1844 = vmul.f32 %v1795, %v1842
    %v1845 = vpack.c.bf16 %v1844, %v1843
    %v1847 = vsel %vm586, %v1845, 0
    %1849 = vmatprep.subr.bf16.mxu0 0
    %1850 = vmatpush1.bf16.msra.mxu0 %v1711
    %1851 = vmatprep.subr.bf16.mxu0 0
    %1852 = vmatpush1.bf16.msra.mxu0 %v1712
    %1853 = vmatprep.subr.bf16.mxu0 0
    %1854 = vmatpush1.bf16.msra.mxu0 %v1713
    %1855 = vmatprep.subr.bf16.mxu0 0
    %1856 = vmatpush1.bf16.msra.mxu0 %v1714
    %1857 = vmatprep.subr.bf16.mxu0 0
    %1858 = vmatpush1.bf16.msra.mxu0 0
    %1859 = vmatprep.subr.bf16.mxu0 0
    %1860 = vmatpush1.bf16.msra.mxu0 0
    %1861 = vmatprep.subr.bf16.mxu0 0
    %1862 = vmatpush1.bf16.msra.mxu0 0
    %1863 = vmatprep.subr.bf16.mxu0 0
    %1864 = vmatpush1.bf16.msra.mxu0 0
    %1865 = vmatprep.subr.bf16.mxu0 0
    %1866 = vmatpush1.bf16.msra.mxu0 0
    %1867 = vmatprep.subr.bf16.mxu0 0
    %1868 = vmatpush1.bf16.msra.mxu0 0
    %1869 = vmatprep.subr.bf16.mxu0 0
    %1870 = vmatpush1.bf16.msra.mxu0 0
    %1871 = vmatprep.subr.bf16.mxu0 0
    %1872 = vmatpush1.bf16.msra.mxu0 0
    %1873 = vmatprep.subr.bf16.mxu0 0
    %1874 = vmatpush1.bf16.msra.mxu0 0
    %1875 = vmatprep.subr.bf16.mxu0 0
    %1876 = vmatpush1.bf16.msra.mxu0 0
    %1877 = vmatprep.subr.bf16.mxu0 0
    %1878 = vmatpush1.bf16.msra.mxu0 0
    %1879 = vmatprep.subr.bf16.mxu0 0
    %1880 = vmatpush1.bf16.msra.mxu0 0
    %1881 = vmatprep.mubr.bf16.mxu0 0
    %1882 = vmatmul.mubr.bf16.gmra.mrb[0].mxu0 %v1847
    %v1883 = vpop.f32.mrb[0].mxu0
    %v1884 = vadd.f32 0.0, %v1883
    %v1885 = vpop.f32.mrb[0].mxu0
    %v1886 = vpop.f32.mrb[0].mxu0
    %v1887 = vadd.f32 0.0, %v1886
    %v1888 = vpop.f32.mrb[0].mxu0
    %1889 = vdwg.mxu0
    %v1890 = vpack.c.bf16 %v1887, %v1884
    %s1891 = scalar_lea.vmem %s3, 32
    %v1892 = vld [vmem:[%s1891] sm:$0xf]
    %v1893 = vld [vmem:[%s1891 + $0x4] sm:$0xf]
    %v1894 = vld [vmem:[%s1891 + $0x8] sm:$0xf]
    %v1895 = vld [vmem:[%s1891 + $0xc] sm:$0xf]
    %v1896 = vld [vmem:[%s1891 + $0x10] sm:$0xf]
    %v1897 = vld [vmem:[%s1891 + $0x14] sm:$0xf]
    %v1898 = vld [vmem:[%s1891 + $0x18] sm:$0xf]
    %v1899 = vld [vmem:[%s1891 + $0x1c] sm:$0xf]
    %v1900 = vld [vmem:[%s6 + $0x1a] sm:$0x1]
    %v1901 = vlaneseq
    %v1902 = vshrl.u32 %v1901, 7
    %v1903 = vsub.s32 0, %v1902
    %v1904 = vrot.slane %v1900, %v1903
    %v1913 = vunpack.c.l.b16 %v1892
    %v1914 = vunpack.c.l.b16 %v1893
    %v1915 = vunpack.c.l.b16 %v1894
    %v1916 = vunpack.c.l.b16 %v1895
    %v1917 = vunpack.c.l.b16 %v1896
    %v1918 = vunpack.c.l.b16 %v1897
    %v1919 = vunpack.c.l.b16 %v1898
    %v1920 = vunpack.c.l.b16 %v1899
    %v1921 = vpack.c.b16 %v1914, %v1913
    %v1922 = vpack.c.b16 %v1916, %v1915
    %v1923 = vpack.c.b16 %v1918, %v1917
    %v1924 = vpack.c.b16 %v1920, %v1919
    %v1930 = vsel %vm586, %v1890, 0
    %1932 = vmatprep.subr.bf16.mxu0 0
    %1933 = vmatpush1.bf16.msra.mxu0 %v1921
    %1934 = vmatprep.subr.bf16.mxu0 0
    %1935 = vmatpush1.bf16.msra.mxu0 %v1922
    %1936 = vmatprep.subr.bf16.mxu0 0
    %1937 = vmatpush1.bf16.msra.mxu0 %v1923
    %1938 = vmatprep.subr.bf16.mxu0 0
    %1939 = vmatpush1.bf16.msra.mxu0 %v1924
    %1940 = vmatprep.subr.bf16.mxu0 0
    %1941 = vmatpush1.bf16.msra.mxu0 0
    %1942 = vmatprep.subr.bf16.mxu0 0
    %1943 = vmatpush1.bf16.msra.mxu0 0
    %1944 = vmatprep.subr.bf16.mxu0 0
    %1945 = vmatpush1.bf16.msra.mxu0 0
    %1946 = vmatprep.subr.bf16.mxu0 0
    %1947 = vmatpush1.bf16.msra.mxu0 0
    %1948 = vmatprep.subr.bf16.mxu0 0
    %1949 = vmatpush1.bf16.msra.mxu0 0
    %1950 = vmatprep.subr.bf16.mxu0 0
    %1951 = vmatpush1.bf16.msra.mxu0 0
    %1952 = vmatprep.subr.bf16.mxu0 0
    %1953 = vmatpush1.bf16.msra.mxu0 0
    %1954 = vmatprep.subr.bf16.mxu0 0
    %1955 = vmatpush1.bf16.msra.mxu0 0
    %1956 = vmatprep.subr.bf16.mxu0 0
    %1957 = vmatpush1.bf16.msra.mxu0 0
    %1958 = vmatprep.subr.bf16.mxu0 0
    %1959 = vmatpush1.bf16.msra.mxu0 0
    %1960 = vmatprep.subr.bf16.mxu0 0
    %1961 = vmatpush1.bf16.msra.mxu0 0
    %1962 = vmatprep.subr.bf16.mxu0 0
    %1963 = vmatpush1.bf16.msra.mxu0 0
    %1964 = vmatprep.mubr.bf16.mxu0 0
    %1965 = vmatmul.mubr.bf16.gmra.mrb[0].mxu0 %v1930
    %v1966 = vpop.f32.mrb[0].mxu0
    %v1967 = vadd.f32 %v1904, %v1966
    %v1968 = vpop.f32.mrb[0].mxu0
    %v1969 = vpop.f32.mrb[0].mxu0
    %v1970 = vadd.f32 %v1904, %v1969
    %v1971 = vpop.f32.mrb[0].mxu0
    %1972 = vdwg.mxu0
    %v1973 = vadd.f32 %v1528, %v1967
    %v1974 = vadd.f32 %v1529, %v1970
    %v1975 = vld [vmem:[%s6 + $0x1b] sm:$0x1]
    %v1976 = vld [vmem:[%s6 + $0x1c] sm:$0x1]
    %v1977 = vsel %vm586, %v1973, 0.0
    %1978 = vadd.xlane.f32.xlu0 %v1977
    %v1979 = vpop.xlane.xlu0 %1978
    %v1980 = vsel %vm586, %v1974, 0.0
    %1981 = vadd.xlane.f32.xlu0 %v1980
    %v1982 = vpop.xlane.xlu0 %1981
    %v1983 = vmul.f32 %v1979, %v593
    %v1984 = vmul.f32 %v1982, %v593
    %v1985 = vsub.f32 %v1973, %v1983
    %v1986 = vsub.f32 %v1974, %v1984
    %v1987 = vmul.f32 %v1985, %v1985
    %v1988 = vmul.f32 %v1986, %v1986
    %v1989 = vsel %vm586, %v1987, 0.0
    %1990 = vadd.xlane.f32.xlu0 %v1989
    %v1991 = vpop.xlane.xlu0 %1990
    %v1992 = vsel %vm586, %v1988, 0.0
    %1993 = vadd.xlane.f32.xlu0 %v1992
    %v1994 = vpop.xlane.xlu0 %1993
    %v1995 = vmul.f32 %v1991, %v593
    %v1996 = vmul.f32 %v1994, %v593
    %v1997 = vadd.f32 %v1995, 1e-05
    %v1998 = vadd.f32 %v1996, 1e-05
    %v1999 = vrsqrt.pop %v1997
    %v2000 = vrsqrt.pop %v1998
    %v2001 = vmul.f32 %v1985, %v1999
    %v2002 = vmul.f32 %v1986, %v2000
    %v2003 = vlaneseq
    %v2004 = vshrl.u32 %v2003, 7
    %v2005 = vsub.s32 0, %v2004
    %v2006 = vrot.slane %v1975, %v2005
    %v2007 = vmul.f32 %v2001, %v2006
    %v2008 = vmul.f32 %v2002, %v2006
    %v2009 = vlaneseq
    %v2010 = vshrl.u32 %v2009, 7
    %v2011 = vsub.s32 0, %v2010
    %v2012 = vrot.slane %v1976, %v2011
    %v2013 = vadd.f32 %v2007, %v2012
    %v2014 = vadd.f32 %v2008, %v2012
    %v2015 = vpack.c.bf16 %v2014, %v2013
    %s2016 = scalar_lea.vmem %s4, 64
    %v2017 = vld [vmem:[%s2016] sm:$0xff]
    %v2018 = vld [vmem:[%s2016 + $0x8] sm:$0xff]
    %v2019 = vld [vmem:[%s2016 + $0x10] sm:$0xff]
    %v2020 = vld [vmem:[%s2016 + $0x18] sm:$0xff]
    %v2021 = vld [vmem:[%s2016 + $0x20] sm:$0xff]
    %v2022 = vld [vmem:[%s2016 + $0x28] sm:$0xff]
    %v2023 = vld [vmem:[%s2016 + $0x30] sm:$0xff]
    %v2024 = vld [vmem:[%s2016 + $0x38] sm:$0xff]
    %s2025 = scalar_lea.vmem %s7, 1
    %v2026 = vld [vmem:[%s2025] ss:$2 sm:$0x3]
    %v2028 = vlaneseq
    %v2029 = vshrl.u32 %v2028, 7
    %v2030 = vsub.s32 0, %v2029
    %v2031 = vrot.slane %v2026, %v2030
    %v2032 = vlaneseq
    %v2033 = vshrl.u32 %v2032, 7
    %v2034 = vsub.s32 1, %v2033
    %v2035 = vrot.slane %v2026, %v2034
    %v2046 = vunpack.c.l.b16 %v2017
    %v2047 = vunpack.c.h.b16 %v2017
    %v2048 = vunpack.c.l.b16 %v2018
    %v2049 = vunpack.c.h.b16 %v2018
    %v2050 = vunpack.c.l.b16 %v2019
    %v2051 = vunpack.c.h.b16 %v2019
    %v2052 = vunpack.c.l.b16 %v2020
    %v2053 = vunpack.c.h.b16 %v2020
    %v2054 = vunpack.c.l.b16 %v2021
    %v2055 = vunpack.c.h.b16 %v2021
    %v2056 = vunpack.c.l.b16 %v2022
    %v2057 = vunpack.c.h.b16 %v2022
    %v2058 = vunpack.c.l.b16 %v2023
    %v2059 = vunpack.c.h.b16 %v2023
    %v2060 = vunpack.c.l.b16 %v2024
    %v2061 = vunpack.c.h.b16 %v2024
    %v2062 = vpack.c.b16 %v2048, %v2046
    %v2063 = vpack.c.b16 %v2049, %v2047
    %v2064 = vpack.c.b16 %v2052, %v2050
    %v2065 = vpack.c.b16 %v2053, %v2051
    %v2066 = vpack.c.b16 %v2056, %v2054
    %v2067 = vpack.c.b16 %v2057, %v2055
    %v2068 = vpack.c.b16 %v2060, %v2058
    %v2069 = vpack.c.b16 %v2061, %v2059
    %v2079 = vsel %vm586, %v2015, 0
    %2081 = vmatprep.subr.bf16.mxu0 %v2063
    %2082 = vmatpush1.bf16.msra.mxu0 %v2062
    %2083 = vmatprep.subr.bf16.mxu0 %v2065
    %2084 = vmatpush1.bf16.msra.mxu0 %v2064
    %2085 = vmatprep.subr.bf16.mxu0 %v2067
    %2086 = vmatpush1.bf16.msra.mxu0 %v2066
    %2087 = vmatprep.subr.bf16.mxu0 %v2069
    %2088 = vmatpush1.bf16.msra.mxu0 %v2068
    %2089 = vmatprep.subr.bf16.mxu0 0
    %2090 = vmatpush1.bf16.msra.mxu0 0
    %2091 = vmatprep.subr.bf16.mxu0 0
    %2092 = vmatpush1.bf16.msra.mxu0 0
    %2093 = vmatprep.subr.bf16.mxu0 0
    %2094 = vmatpush1.bf16.msra.mxu0 0
    %2095 = vmatprep.subr.bf16.mxu0 0
    %2096 = vmatpush1.bf16.msra.mxu0 0
    %2097 = vmatprep.subr.bf16.mxu0 0
    %2098 = vmatpush1.bf16.msra.mxu0 0
    %2099 = vmatprep.subr.bf16.mxu0 0
    %2100 = vmatpush1.bf16.msra.mxu0 0
    %2101 = vmatprep.subr.bf16.mxu0 0
    %2102 = vmatpush1.bf16.msra.mxu0 0
    %2103 = vmatprep.subr.bf16.mxu0 0
    %2104 = vmatpush1.bf16.msra.mxu0 0
    %2105 = vmatprep.subr.bf16.mxu0 0
    %2106 = vmatpush1.bf16.msra.mxu0 0
    %2107 = vmatprep.subr.bf16.mxu0 0
    %2108 = vmatpush1.bf16.msra.mxu0 0
    %2109 = vmatprep.subr.bf16.mxu0 0
    %2110 = vmatpush1.bf16.msra.mxu0 0
    %2111 = vmatprep.subr.bf16.mxu0 0
    %2112 = vmatpush1.bf16.msra.mxu0 0
    %2113 = vmatprep.mubr.bf16.mxu0 0
    %2114 = vmatmul.mubr.bf16.gmra.mrb[0].mxu0 %v2079
    %v2115 = vpop.f32.mrb[0].mxu0
    %v2116 = vadd.f32 %v2031, %v2115
    %v2117 = vpop.f32.mrb[0].mxu0
    %v2118 = vadd.f32 %v2035, %v2117
    %v2119 = vpop.f32.mrb[0].mxu0
    %v2120 = vadd.f32 %v2031, %v2119
    %v2121 = vpop.f32.mrb[0].mxu0
    %v2122 = vadd.f32 %v2035, %v2121
    %2123 = vdwg.mxu0
    %v2124 = vmul.f32 %v2116, -1.702
    %v2125 = vmul.f32 %v2118, -1.702
    %v2126 = vmul.f32 %v2120, -1.702
    %v2127 = vmul.f32 %v2122, -1.702
    %v2128 = vmul.f32 %v2124, 1.442695
    %v2129 = vpow.pop %v2128
    %v2130 = vmul.f32 %v2125, 1.442695
    %v2131 = vpow.pop %v2130
    %v2132 = vmul.f32 %v2126, 1.442695
    %v2133 = vpow.pop %v2132
    %v2134 = vmul.f32 %v2127, 1.442695
    %v2135 = vpow.pop %v2134
    %v2136 = vadd.f32 %v2129, 1.0
    %v2137 = vadd.f32 %v2131, 1.0
    %v2138 = vadd.f32 %v2133, 1.0
    %v2139 = vadd.f32 %v2135, 1.0
    %v2140 = vrcp.pop %v2136
    %v2141 = vmul.f32 1.0, %v2140
    %v2142 = vrcp.pop %v2137
    %v2143 = vmul.f32 1.0, %v2142
    %v2144 = vrcp.pop %v2138
    %v2145 = vmul.f32 1.0, %v2144
    %v2146 = vrcp.pop %v2139
    %v2147 = vmul.f32 1.0, %v2146
    %v2148 = vmul.f32 %v2116, %v2141
    %v2149 = vmul.f32 %v2118, %v2143
    %v2150 = vmul.f32 %v2120, %v2145
    %v2151 = vmul.f32 %v2122, %v2147
    %v2152 = vpack.c.bf16 %v2150, %v2148
    %v2153 = vpack.c.bf16 %v2151, %v2149
    %s2154 = scalar_lea.vmem %s5, 128
    %v2155 = vld [vmem:[%s2154] sm:$0xf]
    %v2156 = vld [vmem:[%s2154 + $0x4] sm:$0xf]
    %v2157 = vld [vmem:[%s2154 + $0x8] sm:$0xf]
    %v2158 = vld [vmem:[%s2154 + $0xc] sm:$0xf]
    %v2159 = vld [vmem:[%s2154 + $0x10] sm:$0xf]
    %v2160 = vld [vmem:[%s2154 + $0x14] sm:$0xf]
    %v2161 = vld [vmem:[%s2154 + $0x18] sm:$0xf]
    %v2162 = vld [vmem:[%s2154 + $0x1c] sm:$0xf]
    %v2163 = vld [vmem:[%s2154 + $0x20] sm:$0xf]
    %v2164 = vld [vmem:[%s2154 + $0x24] sm:$0xf]
    %v2165 = vld [vmem:[%s2154 + $0x28] sm:$0xf]
    %v2166 = vld [vmem:[%s2154 + $0x2c] sm:$0xf]
    %v2167 = vld [vmem:[%s2154 + $0x30] sm:$0xf]
    %v2168 = vld [vmem:[%s2154 + $0x34] sm:$0xf]
    %v2169 = vld [vmem:[%s2154 + $0x38] sm:$0xf]
    %v2170 = vld [vmem:[%s2154 + $0x3c] sm:$0xf]
    %v2171 = vld [vmem:[%s2154 + $0x40] sm:$0xf]
    %v2172 = vld [vmem:[%s2154 + $0x44] sm:$0xf]
    %v2173 = vld [vmem:[%s2154 + $0x48] sm:$0xf]
    %v2174 = vld [vmem:[%s2154 + $0x4c] sm:$0xf]
    %v2175 = vld [vmem:[%s2154 + $0x50] sm:$0xf]
    %v2176 = vld [vmem:[%s2154 + $0x54] sm:$0xf]
    %v2177 = vld [vmem:[%s2154 + $0x58] sm:$0xf]
    %v2178 = vld [vmem:[%s2154 + $0x5c] sm:$0xf]
    %v2179 = vld [vmem:[%s2154 + $0x60] sm:$0xf]
    %v2180 = vld [vmem:[%s2154 + $0x64] sm:$0xf]
    %v2181 = vld [vmem:[%s2154 + $0x68] sm:$0xf]
    %v2182 = vld [vmem:[%s2154 + $0x6c] sm:$0xf]
    %v2183 = vld [vmem:[%s2154 + $0x70] sm:$0xf]
    %v2184 = vld [vmem:[%s2154 + $0x74] sm:$0xf]
    %v2185 = vld [vmem:[%s2154 + $0x78] sm:$0xf]
    %v2186 = vld [vmem:[%s2154 + $0x7c] sm:$0xf]
    %v2219 = vunpack.c.l.b16 %v2155
    %v2220 = vunpack.c.l.b16 %v2156
    %v2221 = vunpack.c.l.b16 %v2157
    %v2222 = vunpack.c.l.b16 %v2158
    %v2223 = vunpack.c.l.b16 %v2159
    %v2224 = vunpack.c.l.b16 %v2160
    %v2225 = vunpack.c.l.b16 %v2161
    %v2226 = vunpack.c.l.b16 %v2162
    %v2227 = vunpack.c.l.b16 %v2163
    %v2228 = vunpack.c.l.b16 %v2164
    %v2229 = vunpack.c.l.b16 %v2165
    %v2230 = vunpack.c.l.b16 %v2166
    %v2231 = vunpack.c.l.b16 %v2167
    %v2232 = vunpack.c.l.b16 %v2168
    %v2233 = vunpack.c.l.b16 %v2169
    %v2234 = vunpack.c.l.b16 %v2170
    %v2235 = vunpack.c.l.b16 %v2171
    %v2236 = vunpack.c.l.b16 %v2172
    %v2237 = vunpack.c.l.b16 %v2173
    %v2238 = vunpack.c.l.b16 %v2174
    %v2239 = vunpack.c.l.b16 %v2175
    %v2240 = vunpack.c.l.b16 %v2176
    %v2241 = vunpack.c.l.b16 %v2177
    %v2242 = vunpack.c.l.b16 %v2178
    %v2243 = vunpack.c.l.b16 %v2179
    %v2244 = vunpack.c.l.b16 %v2180
    %v2245 = vunpack.c.l.b16 %v2181
    %v2246 = vunpack.c.l.b16 %v2182
    %v2247 = vunpack.c.l.b16 %v2183
    %v2248 = vunpack.c.l.b16 %v2184
    %v2249 = vunpack.c.l.b16 %v2185
    %v2250 = vunpack.c.l.b16 %v2186
    %v2251 = vpack.c.b16 %v2220, %v2219
    %v2252 = vpack.c.b16 %v2222, %v2221
    %v2253 = vpack.c.b16 %v2224, %v2223
    %v2254 = vpack.c.b16 %v2226, %v2225
    %v2255 = vpack.c.b16 %v2228, %v2227
    %v2256 = vpack.c.b16 %v2230, %v2229
    %v2257 = vpack.c.b16 %v2232, %v2231
    %v2258 = vpack.c.b16 %v2234, %v2233
    %v2259 = vpack.c.b16 %v2236, %v2235
    %v2260 = vpack.c.b16 %v2238, %v2237
    %v2261 = vpack.c.b16 %v2240, %v2239
    %v2262 = vpack.c.b16 %v2242, %v2241
    %v2263 = vpack.c.b16 %v2244, %v2243
    %v2264 = vpack.c.b16 %v2246, %v2245
    %v2265 = vpack.c.b16 %v2248, %v2247
    %v2266 = vpack.c.b16 %v2250, %v2249
    %2283 = vmatprep.subr.bf16.mxu0 0
    %2284 = vmatpush1.bf16.msra.mxu0 %v2251
    %2285 = vmatprep.subr.bf16.mxu0 0
    %2286 = vmatpush1.bf16.msra.mxu0 %v2252
    %2287 = vmatprep.subr.bf16.mxu0 0
    %2288 = vmatpush1.bf16.msra.mxu0 %v2253
    %2289 = vmatprep.subr.bf16.mxu0 0
    %2290 = vmatpush1.bf16.msra.mxu0 %v2254
    %2291 = vmatprep.subr.bf16.mxu0 0
    %2292 = vmatpush1.bf16.msra.mxu0 %v2255
    %2293 = vmatprep.subr.bf16.mxu0 0
    %2294 = vmatpush1.bf16.msra.mxu0 %v2256
    %2295 = vmatprep.subr.bf16.mxu0 0
    %2296 = vmatpush1.bf16.msra.mxu0 %v2257
    %2297 = vmatprep.subr.bf16.mxu0 0
    %2298 = vmatpush1.bf16.msra.mxu0 %v2258
    %2299 = vmatprep.subr.bf16.mxu0 0
    %2300 = vmatpush1.bf16.msra.mxu0 %v2259
    %2301 = vmatprep.subr.bf16.mxu0 0
    %2302 = vmatpush1.bf16.msra.mxu0 %v2260
    %2303 = vmatprep.subr.bf16.mxu0 0
    %2304 = vmatpush1.bf16.msra.mxu0 %v2261
    %2305 = vmatprep.subr.bf16.mxu0 0
    %2306 = vmatpush1.bf16.msra.mxu0 %v2262
    %2307 = vmatprep.subr.bf16.mxu0 0
    %2308 = vmatpush1.bf16.msra.mxu0 %v2263
    %2309 = vmatprep.subr.bf16.mxu0 0
    %2310 = vmatpush1.bf16.msra.mxu0 %v2264
    %2311 = vmatprep.subr.bf16.mxu0 0
    %2312 = vmatpush1.bf16.msra.mxu0 %v2265
    %2313 = vmatprep.subr.bf16.mxu0 0
    %2314 = vmatpush1.bf16.msra.mxu0 %v2266
    %2315 = vmatprep.mubr.bf16.mxu0 %v2153
    %2316 = vmatmul.mubr.bf16.gmra.mrb[0].mxu0 %v2152
    %v2317 = vpop.f32.mrb[0].mxu0
    %v2318 = vadd.f32 0.0, %v2317
    %v2319 = vpop.f32.mrb[0].mxu0
    %v2320 = vpop.f32.mrb[0].mxu0
    %v2321 = vadd.f32 0.0, %v2320
    %v2322 = vpop.f32.mrb[0].mxu0
    %2323 = vdwg.mxu0
    %v2324 = vadd.f32 %v1973, %v2318
    %v2325 = vadd.f32 %v1974, %v2321
    %v2326 = vld [vmem:[%s6 + $0x1d] sm:$0x1]
    %v2327 = vlaneseq
    %v2328 = vshrl.u32 %v2327, 7
    %v2329 = vsub.s32 0, %v2328
    %v2330 = vrot.slane %v2326, %v2329
    %v2331 = vadd.f32 %v2324, %v2330
    %v2332 = vadd.f32 %v2325, %v2330
    %v2334 = vrot.slane %v2332, 7
    %vm2336 = vcmask 1040384
    %v2337 = vsel %vm2336, %v2331, %v2334
    %v2338 = vld [vmem:[%s6 + $0xa] sm:$0x1]
    %v2339 = vld [vmem:[%s6 + $0xb] sm:$0x1]
    %vm2340 = vcmask 517120
    %v2341 = vsel %vm2340, %v2337, 0.0
    %2342 = vadd.xlane.f32.xlu0 %v2341
    %v2343 = vpop.xlane.xlu0 %2342
    %v2344 = vmul.f32 %v2343, %v593
    %v2345 = vsub.f32 %v2337, %v2344
    %v2346 = vmul.f32 %v2345, %v2345
    %v2347 = vsel %vm2340, %v2346, 0.0
    %2348 = vadd.xlane.f32.xlu0 %v2347
    %v2349 = vpop.xlane.xlu0 %2348
    %v2350 = vmul.f32 %v2349, %v593
    %v2351 = vadd.f32 %v2350, 1e-05
    %v2352 = vrsqrt.pop %v2351
    %v2353 = vmul.f32 %v2345, %v2352
    %v2354 = vlaneseq
    %v2355 = vshrl.u32 %v2354, 7
    %v2356 = vsub.s32 0, %v2355
    %v2357 = vrot.slane %v2338, %v2356
    %v2358 = vmul.f32 %v2353, %v2357
    %v2359 = vlaneseq
    %v2360 = vshrl.u32 %v2359, 7
    %v2361 = vsub.s32 0, %v2360
    %v2362 = vrot.slane %v2339, %v2361
    %v2363 = vadd.f32 %v2358, %v2362
    %v2364 = vpack.c.bf16 %v2363, %v2363
    %v2365 = vld [vmem:[%s8] sm:$0xf]
    %v2366 = vld [vmem:[%s8 + $0x4] sm:$0xf]
    %v2367 = vld [vmem:[%s8 + $0x8] sm:$0xf]
    %v2368 = vld [vmem:[%s8 + $0xc] sm:$0xf]
    %v2369 = vld [vmem:[%s8 + $0x10] sm:$0xf]
    %v2370 = vld [vmem:[%s8 + $0x14] sm:$0xf]
    %v2371 = vld [vmem:[%s8 + $0x18] sm:$0xf]
    %v2372 = vld [vmem:[%s8 + $0x1c] sm:$0xf]
    %v2381 = vunpack.c.l.b16 %v2365
    %v2382 = vunpack.c.l.b16 %v2366
    %v2383 = vunpack.c.l.b16 %v2367
    %v2384 = vunpack.c.l.b16 %v2368
    %v2385 = vunpack.c.l.b16 %v2369
    %v2386 = vunpack.c.l.b16 %v2370
    %v2387 = vunpack.c.l.b16 %v2371
    %v2388 = vunpack.c.l.b16 %v2372
    %v2389 = vpack.c.b16 %v2382, %v2381
    %v2390 = vpack.c.b16 %v2384, %v2383
    %v2391 = vpack.c.b16 %v2386, %v2385
    %v2392 = vpack.c.b16 %v2388, %v2387
    %v2398 = vsel %vm586, %v2364, 0
    %2400 = vmatprep.subr.bf16.mxu0 0
    %2401 = vmatpush1.bf16.msra.mxu0 %v2389
    %2402 = vmatprep.subr.bf16.mxu0 0
    %2403 = vmatpush1.bf16.msra.mxu0 %v2390
    %2404 = vmatprep.subr.bf16.mxu0 0
    %2405 = vmatpush1.bf16.msra.mxu0 %v2391
    %2406 = vmatprep.subr.bf16.mxu0 0
    %2407 = vmatpush1.bf16.msra.mxu0 %v2392
    %2408 = vmatprep.subr.bf16.mxu0 0
    %2409 = vmatpush1.bf16.msra.mxu0 0
    %2410 = vmatprep.subr.bf16.mxu0 0
    %2411 = vmatpush1.bf16.msra.mxu0 0
    %2412 = vmatprep.subr.bf16.mxu0 0
    %2413 = vmatpush1.bf16.msra.mxu0 0
    %2414 = vmatprep.subr.bf16.mxu0 0
    %2415 = vmatpush1.bf16.msra.mxu0 0
    %2416 = vmatprep.subr.bf16.mxu0 0
    %2417 = vmatpush1.bf16.msra.mxu0 0
    %2418 = vmatprep.subr.bf16.mxu0 0
    %2419 = vmatpush1.bf16.msra.mxu0 0
    %2420 = vmatprep.subr.bf16.mxu0 0
    %2421 = vmatpush1.bf16.msra.mxu0 0
    %2422 = vmatprep.subr.bf16.mxu0 0
    %2423 = vmatpush1.bf16.msra.mxu0 0
    %2424 = vmatprep.subr.bf16.mxu0 0
    %2425 = vmatpush1.bf16.msra.mxu0 0
    %2426 = vmatprep.subr.bf16.mxu0 0
    %2427 = vmatpush1.bf16.msra.mxu0 0
    %2428 = vmatprep.subr.bf16.mxu0 0
    %2429 = vmatpush1.bf16.msra.mxu0 0
    %2430 = vmatprep.subr.bf16.mxu0 0
    %2431 = vmatpush1.bf16.msra.mxu0 0
    %2432 = vmatprep.mubr.bf16.mxu0 0
    %2433 = vmatmul.mubr.bf16.gmra.mrb[0].mxu0 %v2398
    %v2434 = vpop.f32.mrb[0].mxu0
    %v2435 = vadd.f32 0.0, %v2434
    %v2436 = vpop.f32.mrb[0].mxu0
    %v2437 = vpop.f32.mrb[0].mxu0
    %v2438 = vpop.f32.mrb[0].mxu0
    %2439 = vdwg.mxu0
    %v2440 = vmul.f32 %v2435, %v2435
    %vm2441 = vcmask 254976
    %v2442 = vsel %vm2441, %v2440, 0.0
    %2443 = vadd.xlane.f32.xlu0 %v2442
    %v2444 = vpop.xlane.xlu0 %2443
    %v2445 = vadd.f32 %v2444, 1e-12
    %v2446 = vrsqrt.pop %v2445
    %v2447 = vmul.f32 %v2435, %v2446
    %v2448 = vpack.c.bf16 %v2447, %v2447
    %v2449 = vld [vmem:[%s9] sm:$0xf]
    %v2450 = vld [vmem:[%s9 + $0x4] sm:$0xf]
    %v2451 = vld [vmem:[%s9 + $0x8] sm:$0xf]
    %v2452 = vld [vmem:[%s9 + $0xc] sm:$0xf]
    %v2453 = vld [vmem:[%s10] sm:$0x1]
    %v2455 = vlaneseq
    %v2456 = vshrl.u32 %v2455, 7
    %v2457 = vsub.s32 0, %v2456
    %v2458 = vrot.slane %v2453, %v2457
    %v2464 = vunpack.c.l.b16 %v2449
    %v2465 = vunpack.c.l.b16 %v2450
    %v2466 = vunpack.c.l.b16 %v2451
    %v2467 = vunpack.c.l.b16 %v2452
    %v2468 = vpack.c.b16 %v2465, %v2464
    %v2469 = vpack.c.b16 %v2467, %v2466
    %vm2472 = vcmask 261120
    %v2474 = vsel %vm2472, %v2448, 0
    %2476 = vmatprep.subr.bf16.mxu0 0
    %2477 = vmatpush1.bf16.msra.mxu0 %v2468
    %2478 = vmatprep.subr.bf16.mxu0 0
    %2479 = vmatpush1.bf16.msra.mxu0 %v2469
    %2480 = vmatprep.subr.bf16.mxu0 0
    %2481 = vmatpush1.bf16.msra.mxu0 0
    %2482 = vmatprep.subr.bf16.mxu0 0
    %2483 = vmatpush1.bf16.msra.mxu0 0
    %2484 = vmatprep.subr.bf16.mxu0 0
    %2485 = vmatpush1.bf16.msra.mxu0 0
    %2486 = vmatprep.subr.bf16.mxu0 0
    %2487 = vmatpush1.bf16.msra.mxu0 0
    %2488 = vmatprep.subr.bf16.mxu0 0
    %2489 = vmatpush1.bf16.msra.mxu0 0
    %2490 = vmatprep.subr.bf16.mxu0 0
    %2491 = vmatpush1.bf16.msra.mxu0 0
    %2492 = vmatprep.subr.bf16.mxu0 0
    %2493 = vmatpush1.bf16.msra.mxu0 0
    %2494 = vmatprep.subr.bf16.mxu0 0
    %2495 = vmatpush1.bf16.msra.mxu0 0
    %2496 = vmatprep.subr.bf16.mxu0 0
    %2497 = vmatpush1.bf16.msra.mxu0 0
    %2498 = vmatprep.subr.bf16.mxu0 0
    %2499 = vmatpush1.bf16.msra.mxu0 0
    %2500 = vmatprep.subr.bf16.mxu0 0
    %2501 = vmatpush1.bf16.msra.mxu0 0
    %2502 = vmatprep.subr.bf16.mxu0 0
    %2503 = vmatpush1.bf16.msra.mxu0 0
    %2504 = vmatprep.subr.bf16.mxu0 0
    %2505 = vmatpush1.bf16.msra.mxu0 0
    %2506 = vmatprep.subr.bf16.mxu0 0
    %2507 = vmatpush1.bf16.msra.mxu0 0
    %2508 = vmatprep.mubr.bf16.mxu0 0
    %2509 = vmatmul.mubr.bf16.gmra.mrb[0].mxu0 %v2474
    %v2510 = vpop.f32.mrb[0].mxu0
    %v2511 = vadd.f32 %v2458, %v2510
    %v2512 = vpop.f32.mrb[0].mxu0
    %v2513 = vpop.f32.mrb[0].mxu0
    %v2514 = vpop.f32.mrb[0].mxu0
    %2515 = vdwg.mxu0
    %2516 = vst [vmem:[#allocation2] sm:$0x3] %v2511
    // Predicated region
    $region46: #{_clip_forward.1} parent=1 // pred_check
      _
    $region47: #{_clip_forward.1} parent=1 // pred_check_branch
      %2518 = sbr.rel (0) target = $region49
    $region48: #{_clip_forward.1} parent=1 // pred_region
      %s2520 = ssub.s32 32, 32
      %2521 = vsyncadd [#allocation3], %s2520
      %s2523 = sshll.u32 [#allocation2], 4
      %s2524 = int_to_ptr.vmem [resolvable:$true] %s2523
      %2526 = dma.vmem_to_hbm [thread:$0]  %s2524, 32, %s11, [#allocation3]
    $region49: #{_clip_forward.1} parent=1 // pred_fallthru
      _
    // Predicated region
    $region50: #{_clip_forward.1} parent=1 // pred_check
      _
    $region51: #{_clip_forward.1} parent=1 // pred_check_branch
      %2528 = sbr.rel (0) target = $region53
    $region52: #{_clip_forward.1} parent=1 // pred_region
      %2529 = dma.done [#allocation3], 32
    $region53: #{_clip_forward.1} parent=1 // pred_fallthru
      _
    %2530 = vsyncpa [#allocation3], 1

</llo_original>
